<compile_context>
chip_gen: v7x
topology: tpu7x:2x2x1
jax: 0.10.0
libtpu: 0.0.40
codegen_flags: <defaults>
</compile_context>

<pallas_src>
import functools

import jax
import jax.numpy as jnp
from jax.experimental import pallas as pl
from jax.experimental.pallas import tpu as pltpu


GAMMA = 1.5
LABEL_SMOOTHING = 0.05
MIN_GRID_STEPS = 8          # keep the grid deep enough for 2 TCs + pipelining


# ---------------------------------------------------------------------------
# Kernel
# ---------------------------------------------------------------------------
def _focal_loss_kernel(logits_ref, targets_ref, out_ref, *,
                       gamma, label_smoothing, total_rows, tile_rows,
                       use_mxu_reductions):
    # logits_ref : (T, C) VMEM, native dtype (bf16/f32)
    # targets_ref: (T, 1) int32 VMEM
    # out_ref    : (1, 8, 128) f32 VMEM (lane-dense per-tile partial sum)
    i = pl.program_id(0)

    x = logits_ref[...].astype(jnp.float32)                      # (T, C) f32 math
    t = targets_ref[...]                                         # (T, 1) int32
    tile_n, n_classes = x.shape

    # One-hot "gather" of the target column (TPU-friendly gather replacement).
    col_ids = jax.lax.broadcasted_iota(jnp.int32, x.shape, 1)    # (T, C)
    is_target = col_ids == t                                     # (T, C) bool

    # Log-softmax pieces.  Row max stays on the XLU.
    m = jnp.max(x, axis=-1, keepdims=True)                       # (T, 1)
    shifted = x - m                                              # (T, C)
    exp_shifted = jnp.exp(shifted)                               # (T, C) EUP

    tgt_shifted = jnp.where(is_target, shifted, 0.0)             # (T, C) select
    tgt_exp = jnp.where(is_target, exp_shifted, 0.0)             # (T, C) select

    # shifted_t (enters nll directly -> keep exact on the XLU).
    shifted_t = jnp.sum(tgt_shifted, axis=-1, keepdims=True)     # (T, 1)

    if use_mxu_reductions:
        # Offload plain row sums to the idle MXU: dot against ones((C,128)),
        # every output lane holds the row sum; read lane 0.
        ones_red = jnp.ones((n_classes, 128), dtype=jnp.float32)

        def rowsum(v):
            return jnp.dot(v, ones_red,
                           precision=jax.lax.Precision.HIGHEST,
                           preferred_element_type=jnp.float32)[:, 0:1]

        sum_exp = rowsum(exp_shifted)                            # (T, 1)
        sum_shifted = rowsum(shifted)                            # (T, 1)
        exp_t = rowsum(tgt_exp)                                  # (T, 1)
    else:
        sum_exp = jnp.sum(exp_shifted, axis=-1, keepdims=True)
        sum_shifted = jnp.sum(shifted, axis=-1, keepdims=True)
        exp_t = jnp.sum(tgt_exp, axis=-1, keepdims=True)

    lse = jnp.log(sum_exp)                                       # (T, 1)

    # Smoothed cross-entropy, algebraically reduced:
    #   sum_c smooth_c * (-log p_c)
    #     = (1-ls)*(lse - shifted_t) + ls*lse - (ls/C)*sum_c shifted_c
    nll_t = lse - shifted_t
    ce_row = ((1.0 - label_smoothing) * nll_t
              + label_smoothing * lse
              - (label_smoothing / n_classes) * sum_shifted)     # (T, 1)

    # Focal weight from p_t = exp_t / sum_exp (no second (T,1) exp).
    p_t = exp_t * pl.reciprocal(sum_exp, approx=True)            # (T, 1)
    base = jnp.maximum(1.0 - p_t, 0.0)
    if gamma == 1.5:
        focal_w = base * jnp.sqrt(base)                          # x^1.5 = x*sqrt(x)
    elif gamma == 2.0:
        focal_w = base * base
    elif gamma == 1.0:
        focal_w = base
    else:
        focal_w = jnp.power(base, gamma)

    per_row = focal_w * ce_row                                   # (T, 1)

    # Discard padded rows of the final (partial) tile with a SELECT so any
    # garbage NaN/Inf in unspecified rows cannot leak into the sum.
    row_ids = jax.lax.broadcasted_iota(jnp.int32, (tile_n, 1), 0)
    valid = (i * tile_rows + row_ids) < total_rows
    per_row = jnp.where(valid, per_row, 0.0)

    partial = jnp.sum(per_row)                                   # scalar
    out_ref[...] = jnp.full(out_ref.shape, partial, dtype=jnp.float32)


# ---------------------------------------------------------------------------
# Tiling / wrapper
# ---------------------------------------------------------------------------
def _round_up_8(x):
    return ((int(x) + 7) // 8) * 8


def _round_dn_8(x):
    return max(8, (int(x) // 8) * 8)


def _vmem_capacity_bytes():
    try:
        info = pltpu.get_tpu_info()
        cap = getattr(info, "vmem_capacity_bytes", None)
        if cap:
            return int(cap)
    except Exception:
        pass
    return 64 * 1024 * 1024   # conservative fallback: v7x per-TC VMEM


def _pick_tiling(n, c, itemsize):
    """Rows per grid step + VMEM limit, generation-aware."""
    vmem_phys = _vmem_capacity_bytes()
    budget = (vmem_phys * 3) // 4   # ~48 MiB on v7x (64 MiB), ~96 MiB on v5e/v6e (128 MiB)

    # Per-row VMEM footprint: double-buffered native input block plus roughly
    # eight f32-sized (T, C) temporaries (upcast, shifted, exp, iota, mask,
    # two selects, headroom) plus slack for (T,1)/(T,128) stats.
    per_row = 2 * c * itemsize + 32 * c + 128
    rows_vmem = budget // per_row

    # Target ~4 MiB of native-dtype logits per block (HBM-efficiency sweet spot).
    rows_dma = (4 * 1024 * 1024) // max(1, c * itemsize)

    rows = min(_round_dn_8(rows_vmem), _round_dn_8(rows_dma))
    # Keep at least MIN_GRID_STEPS grid steps (megacore + pipeline depth).
    rows = min(rows, _round_up_8(pl.cdiv(n, MIN_GRID_STEPS)))
    rows = min(rows, _round_up_8(n))
    rows = max(8, rows)
    return rows, int(budget)


def focal_loss(logits, targets, gamma=GAMMA, label_smoothing=LABEL_SMOOTHING,
               tile_rows=None, vmem_limit_bytes=None):
    """logits: (N, C) float (bf16/f32, passed through as-is); targets: (N,) ints.

    Returns scalar float32 mean focal loss matching the PyTorch FocalLoss
    forward (up to the dropped 1e-8 epsilon inside the log).
    """
    n, c = logits.shape
    targets_2d = targets.astype(jnp.int32).reshape(n, 1)
    itemsize = jnp.dtype(logits.dtype).itemsize

    auto_rows, auto_budget = _pick_tiling(n, c, itemsize)
    if tile_rows is None:
        tile_rows = auto_rows
    tile_rows = max(8, (int(tile_rows) // 8) * 8)
    if vmem_limit_bytes is None:
        vmem_limit_bytes = auto_budget
    num_tiles = pl.cdiv(n, tile_rows)

    kernel = functools.partial(
        _focal_loss_kernel,
        gamma=float(gamma),
        label_smoothing=float(label_smoothing),
        total_rows=n,
        tile_rows=tile_rows,
        use_mxu_reductions=(c >= 64),
    )

    partials = pl.pallas_call(
        kernel,
        out_shape=jax.ShapeDtypeStruct((num_tiles, 8, 128), jnp.float32),
        grid=(num_tiles,),
        in_specs=[
            pl.BlockSpec((tile_rows, c), lambda i: (i, 0)),
            pl.BlockSpec((tile_rows, 1), lambda i: (i, 0)),
        ],
        out_specs=pl.BlockSpec((1, 8, 128), lambda i: (i, 0, 0)),
        compiler_params=pltpu.CompilerParams(
            dimension_semantics=("parallel",),
            vmem_limit_bytes=int(vmem_limit_bytes),
        ),
    )(logits, targets_2d)

    # Tiny final reduction + global mean in the wrapper (keeps grid parallel).
    return jnp.sum(partials[:, 0, 0]) / n


# ---------------------------------------------------------------------------
# Pure-JAX reference (faithful port of the PyTorch module, f32 math)
# ---------------------------------------------------------------------------
def _focal_loss_ref(logits, targets, gamma=GAMMA, label_smoothing=LABEL_SMOOTHING):
    x = logits.astype(jnp.float32)
    n, c = x.shape
    one_hot = jax.nn.one_hot(targets, c, dtype=jnp.float32)
    smooth = one_hot * (1.0 - label_smoothing) + label_smoothing / c
    p = jax.nn.softmax(x, axis=-1)
    ce = -smooth * jnp.log(p + 1e-8)
    p_t = jnp.take_along_axis(p, targets[:, None], axis=1)[:, 0]
    w = jnp.power(1.0 - p_t, gamma)
    return jnp.mean(jnp.sum(w[:, None] * ce, axis=1))


if __name__ == "__main__":
    key = jax.random.PRNGKey(0)
    k1, k2 = jax.random.split(key)

    N, C = 45, 128  # N not a multiple of 8 -> exercises partial-tile masking
    logits = jax.random.normal(k1, (N, C), dtype=jnp.float32).astype(jnp.bfloat16)
    targets = jax.random.randint(k2, (N,), 0, C, dtype=jnp.int32)

    # Auto-picked tiling (>= MIN_GRID_STEPS steps) and an explicit override.
    loss_auto = focal_loss(logits, targets)
    loss_tiled = focal_loss(logits, targets, tile_rows=16)
    loss_auto, loss_tiled = jax.block_until_ready((loss_auto, loss_tiled))

    ref = _focal_loss_ref(logits, targets)
    for v in (loss_auto, loss_tiled):
        assert jnp.isfinite(v), v
        assert jnp.allclose(v, ref, rtol=1e-3, atol=1e-5), (v, ref)

    print("KERNEL_OK")
</pallas_src>

<mosaic_0001>
module attributes {stable_mosaic.version = 11 : i64} {
  func.func @_focal_loss_kernel(%arg0: i32, %arg1: memref<8x128xbf16, #tpu.memory_space<vmem>>, %arg2: memref<8x1xi32, #tpu.memory_space<vmem>>, %arg3: memref<1x8x128xf32, #tpu.memory_space<vmem>>) attributes {dimension_semantics = [#tpu.dimension_semantics<parallel>], iteration_bounds = array<i64: 6>, scalar_prefetch = 0 : i64, scratch_operands = 0 : i64, tpu.core_type = #tpu.core_type<tc>, window_params = [{transform_indices = @transform_0, window_bounds = array<i64: 8, 128>}, {transform_indices = @transform_1, window_bounds = array<i64: 8, 1>}, {transform_indices = @transform_2, window_bounds = array<i64: 1, 8, 128>}]} {
    %c0 = arith.constant 0 : index
    %c0_0 = arith.constant 0 : index
    %0 = vector.load %arg1[%c0, %c0_0] : memref<8x128xbf16, #tpu.memory_space<vmem>>, vector<8x128xbf16>
    %1 = arith.extf %0 : vector<8x128xbf16> to vector<8x128xf32>
    %c0_1 = arith.constant 0 : index
    %c0_2 = arith.constant 0 : index
    %2 = vector.load %arg2[%c0_1, %c0_2] : memref<8x1xi32, #tpu.memory_space<vmem>>, vector<8x1xi32>
    %3 = tpu.iota {dimensions = array<i32: 1>} : vector<8x128xi32>
    %4 = vector.broadcast %2 : vector<8x1xi32> to vector<8x128xi32>
    %5 = arith.cmpi eq, %3, %4 : vector<8x128xi32>
    %cst = arith.constant dense<0xFF800000> : vector<8xf32>
    %6 = vector.multi_reduction <maximumf>, %1, %cst [1] : vector<8x128xf32> to vector<8xf32>
    %7 = vector.shape_cast %6 : vector<8xf32> to vector<8x1xf32>
    %8 = vector.broadcast %7 : vector<8x1xf32> to vector<8x128xf32>
    %9 = arith.subf %1, %8 : vector<8x128xf32>
    %10 = math.exp %9 : vector<8x128xf32>
    %cst_3 = arith.constant 0.000000e+00 : f32
    %11 = vector.broadcast %cst_3 : f32 to vector<8x128xf32>
    %12 = arith.select %5, %9, %11 : vector<8x128xi1>, vector<8x128xf32>
    %cst_4 = arith.constant 0.000000e+00 : f32
    %13 = vector.broadcast %cst_4 : f32 to vector<8x128xf32>
    %14 = arith.select %5, %10, %13 : vector<8x128xi1>, vector<8x128xf32>
    %cst_5 = arith.constant dense<0.000000e+00> : vector<8xf32>
    %15 = vector.multi_reduction <add>, %12, %cst_5 [1] : vector<8x128xf32> to vector<8xf32>
    %16 = vector.shape_cast %15 : vector<8xf32> to vector<8x1xf32>
    %cst_6 = arith.constant 1.000000e+00 : f32
    %17 = vector.broadcast %cst_6 : f32 to vector<128x128xf32>
    %cst_7 = arith.constant dense<0.000000e+00> : vector<8x128xf32>
    %18 = tpu.matmul %10, %17, %cst_7 {dimension_numbers = #tpu.dot_dimension_numbers<[1], [0], [0], [1], [0, 0, 1, 1], [], []>, precision = #tpu.contract_precision<fp32>} : vector<8x128xf32>, vector<128x128xf32>, vector<8x128xf32> -> vector<8x128xf32>
    %19 = vector.extract_strided_slice %18 {offsets = [0, 0], sizes = [8, 1], strides = [1, 1]} : vector<8x128xf32> to vector<8x1xf32>
    %cst_8 = arith.constant dense<0.000000e+00> : vector<8x128xf32>
    %20 = tpu.matmul %9, %17, %cst_8 {dimension_numbers = #tpu.dot_dimension_numbers<[1], [0], [0], [1], [0, 0, 1, 1], [], []>, precision = #tpu.contract_precision<fp32>} : vector<8x128xf32>, vector<128x128xf32>, vector<8x128xf32> -> vector<8x128xf32>
    %21 = vector.extract_strided_slice %20 {offsets = [0, 0], sizes = [8, 1], strides = [1, 1]} : vector<8x128xf32> to vector<8x1xf32>
    %cst_9 = arith.constant dense<0.000000e+00> : vector<8x128xf32>
    %22 = tpu.matmul %14, %17, %cst_9 {dimension_numbers = #tpu.dot_dimension_numbers<[1], [0], [0], [1], [0, 0, 1, 1], [], []>, precision = #tpu.contract_precision<fp32>} : vector<8x128xf32>, vector<128x128xf32>, vector<8x128xf32> -> vector<8x128xf32>
    %23 = vector.extract_strided_slice %22 {offsets = [0, 0], sizes = [8, 1], strides = [1, 1]} : vector<8x128xf32> to vector<8x1xf32>
    %24 = math.log %19 : vector<8x1xf32>
    %25 = arith.subf %24, %16 : vector<8x1xf32>
    %cst_10 = arith.constant 0.949999988 : f32
    %26 = vector.broadcast %cst_10 : f32 to vector<8x1xf32>
    %27 = arith.mulf %26, %25 : vector<8x1xf32>
    %cst_11 = arith.constant 5.000000e-02 : f32
    %28 = vector.broadcast %cst_11 : f32 to vector<8x1xf32>
    %29 = arith.mulf %28, %24 : vector<8x1xf32>
    %30 = arith.addf %27, %29 : vector<8x1xf32>
    %cst_12 = arith.constant 3.906250e-04 : f32
    %31 = vector.broadcast %cst_12 : f32 to vector<8x1xf32>
    %32 = arith.mulf %31, %21 : vector<8x1xf32>
    %33 = arith.subf %30, %32 : vector<8x1xf32>
    %34 = tpu.reciprocal %19 {approx = true} : vector<8x1xf32> -> vector<8x1xf32>
    %35 = arith.mulf %23, %34 : vector<8x1xf32>
    %cst_13 = arith.constant 1.000000e+00 : f32
    %36 = vector.broadcast %cst_13 : f32 to vector<8x1xf32>
    %37 = arith.subf %36, %35 : vector<8x1xf32>
    %cst_14 = arith.constant 0.000000e+00 : f32
    %38 = vector.broadcast %cst_14 : f32 to vector<8x1xf32>
    %39 = arith.maximumf %37, %38 : vector<8x1xf32>
    %40 = math.sqrt %39 : vector<8x1xf32>
    %41 = arith.mulf %39, %40 : vector<8x1xf32>
    %42 = arith.mulf %41, %33 : vector<8x1xf32>
    %43 = tpu.iota {dimensions = array<i32: 0>} : vector<8x1xi32>
    %c8_i32 = arith.constant 8 : i32
    %44 = arith.muli %arg0, %c8_i32 : i32
    %45 = vector.broadcast %44 : i32 to vector<8x1xi32>
    %46 = arith.addi %45, %43 : vector<8x1xi32>
    %c45_i32 = arith.constant 45 : i32
    %47 = vector.broadcast %c45_i32 : i32 to vector<8x1xi32>
    %48 = arith.cmpi slt, %46, %47 : vector<8x1xi32>
    %cst_15 = arith.constant 0.000000e+00 : f32
    %49 = vector.broadcast %cst_15 : f32 to vector<8x1xf32>
    %50 = arith.select %48, %42, %49 : vector<8x1xi1>, vector<8x1xf32>
    %51 = vector.shape_cast %50 : vector<8x1xf32> to vector<1x8x1xf32>
    %cst_16 = arith.constant dense<0.000000e+00> : vector<1xf32>
    %52 = vector.multi_reduction <add>, %51, %cst_16 [1, 2] : vector<1x8x1xf32> to vector<1xf32>
    %53 = vector.shape_cast %52 : vector<1xf32> to vector<1x1x1xf32>
    %54 = vector.extract %53[0, 0, 0] : f32 from vector<1x1x1xf32>
    %55 = vector.broadcast %54 : f32 to vector<1x8x128xf32>
    %c0_17 = arith.constant 0 : index
    %c0_18 = arith.constant 0 : index
    %c0_19 = arith.constant 0 : index
    %56 = vector.load %arg3[%c0_17, %c0_18, %c0_19] : memref<1x8x128xf32, #tpu.memory_space<vmem>>, vector<1x8x128xf32>
    tpu.vector_store %arg3[%c0_17, %c0_18, %c0_19], %55 {strides = array<i32>} : memref<1x8x128xf32, #tpu.memory_space<vmem>>, vector<1x8x128xf32>,
    return
  }
  func.func @transform_0(%arg0: i32) -> (i32, i32) {
    %c0_i32 = arith.constant 0 : i32
    %c0_i32_0 = arith.constant 0 : i32
    return %arg0, %c0_i32 : i32, i32
  }
  func.func @transform_1(%arg0: i32) -> (i32, i32) {
    %c0_i32 = arith.constant 0 : i32
    %c0_i32_0 = arith.constant 0 : i32
    return %arg0, %c0_i32 : i32, i32
  }
  func.func @transform_2(%arg0: i32) -> (i32, i32, i32) {
    %c0_i32 = arith.constant 0 : i32
    %c0_i32_0 = arith.constant 0 : i32
    %c0_i32_1 = arith.constant 0 : i32
    return %arg0, %c0_i32, %c0_i32_0 : i32, i32, i32
  }
}

</mosaic_0001>

<llo_original>
// kernel: tpu_custom_call.1
$region0: #{tpu_custom_call.1}
  #allocation0 [shape = 'u32[]', space=smem, size = 0x4, offset = 0x4, fixed_abs, tag = 'smem constant byte address 0x4 - core index']
  #allocation1 [shape = 'u32[144,128]{1,0:T(1,128)}', space=vmem, size = 0x12000, scoped, tag = 'internal scratch']
  %s0 = inlined_call_operand.vmem [shape: bf16[45,128], index: 0, kind: input, shape index: {}]
  %s1 = inlined_call_operand.vmem [shape: s32[45,1], index: 1, kind: input, shape index: {}]
  %s2 = inlined_call_operand.hbm [shape: f32[6,8,128], index: 2, kind: output, shape index: {}]
  %s3 = sld [smem:[#allocation0]]
  $region41: #{tpu_custom_call.1} parent=0
    _
  %s5 = ssub.s32 1, %s3
  %s6 = scalar_select 0, %s5, %s3
  $region1: #{tpu_custom_call.1} parent=0
    #allocation2 [shape = 'u8[8192]{0}', space=vmem, size = 0x2000, scoped, tag = 'output window, operand 0']
    #allocation3 [shape = 's32[2]{0}', space=sflag, size = 0x8, scoped, tag = 'scoped memory for tpu_custom_call.1']
    %7 = vsyncpa [#allocation3], 0
    %s8 = scalar_lea.sflag [#allocation3], 1
    %9 = vsyncpa %s8, 0
    loop: start=0, step=1, limit=8
    $region2: #{tpu_custom_call.1} parent=1 // loop_pre_header
      _
    $region3: #{tpu_custom_call.1} parent=1 // loop_header
      %s11 = sphi 0, %s15
      %p12 = scmp.ge.s32.totalorder %s11, 8
      %s21 = sphi 0, %s23
      %s24 = sphi 0, %s21
      %s25 = sphi 0, %s24
      %s41 = sphi 0, %s25
      %s47 = sphi 0, %s49
      %s50 = sphi 0, %s47
      %s51 = sphi 0, %s50
      %s67 = sphi 0, %s51
      %s73 = sphi 0, %s75
      %s76 = sphi 0, %s73
      %s77 = sphi 0, %s76
      %s93 = sphi 0, %s77
    $region4: #{tpu_custom_call.1} parent=1 // loop_header_branch
      %14 = sbr.rel (%p12) target = $region8
    $region5: #{tpu_custom_call.1} parent=1 // loop_body
      %s16 = ssub.s32 %s11, 1
      %s17 = ssub.s32 %s11, 2
      %s18 = sadd.s32 %s11, 1
      %s19 = ssub.s32 %s11, %s18
      %p20 = scmp.eq.s32.totalorder %s19, 0
      %s22 = sadd.s32 %s21, 1
      %s23 = scalar_select %p20, %s21, %s22
      %p26 = pneg %p20
      %p27 = scmp.eq.s32.totalorder %s11, 5
      %p28 = por %p26, %p27
      %p29 = scmp.ne.s32.totalorder %s21, %s24
      %p30 = scmp.eq.s32.totalorder %s11, 0
      %p31 = por %p29, %p30
      %p32 = scmp.ne.s32.totalorder %s21, %s24
      %p33 = scmp.eq.s32.totalorder %s16, 5
      %p34 = por %p32, %p33
      %p35 = scmp.ne.s32.totalorder %s24, %s25
      %p36 = scmp.eq.s32.totalorder %s16, 0
      %p37 = por %p35, %p36
      %p38 = scmp.ne.s32.totalorder %s24, %s25
      %p39 = scmp.eq.s32.totalorder %s17, 5
      %p40 = por %p38, %p39
      %p42 = scmp.ne.s32.totalorder %s25, %s41
      %p43 = scmp.eq.s32.totalorder %s17, 0
      %p44 = por %p42, %p43
      %s45 = ssub.s32 %s11, %s18
      %p46 = scmp.eq.s32.totalorder %s45, 0
      %s48 = sadd.s32 %s47, 1
      %s49 = scalar_select %p46, %s47, %s48
      %p52 = pneg %p46
      %p53 = scmp.eq.s32.totalorder %s11, 5
      %p54 = por %p52, %p53
      %p55 = scmp.ne.s32.totalorder %s47, %s50
      %p56 = scmp.eq.s32.totalorder %s11, 0
      %p57 = por %p55, %p56
      %p58 = scmp.ne.s32.totalorder %s47, %s50
      %p59 = scmp.eq.s32.totalorder %s16, 5
      %p60 = por %p58, %p59
      %p61 = scmp.ne.s32.totalorder %s50, %s51
      %p62 = scmp.eq.s32.totalorder %s16, 0
      %p63 = por %p61, %p62
      %p64 = scmp.ne.s32.totalorder %s50, %s51
      %p65 = scmp.eq.s32.totalorder %s17, 5
      %p66 = por %p64, %p65
      %p68 = scmp.ne.s32.totalorder %s51, %s67
      %p69 = scmp.eq.s32.totalorder %s17, 0
      %p70 = por %p68, %p69
      %s71 = ssub.s32 %s11, %s18
      %p72 = scmp.eq.s32.totalorder %s71, 0
      %s74 = sadd.s32 %s73, 1
      %s75 = scalar_select %p72, %s73, %s74
      %p78 = pneg %p72
      %p79 = scmp.eq.s32.totalorder %s11, 5
      %p80 = por %p78, %p79
      %p81 = scmp.ne.s32.totalorder %s73, %s76
      %p82 = scmp.eq.s32.totalorder %s11, 0
      %p83 = por %p81, %p82
      %p84 = scmp.ne.s32.totalorder %s73, %s76
      %p85 = scmp.eq.s32.totalorder %s16, 5
      %p86 = por %p84, %p85
      %p87 = scmp.ne.s32.totalorder %s76, %s77
      %p88 = scmp.eq.s32.totalorder %s16, 0
      %p89 = por %p87, %p88
      %p90 = scmp.ne.s32.totalorder %s76, %s77
      %p91 = scmp.eq.s32.totalorder %s17, 5
      %p92 = por %p90, %p91
      %p94 = scmp.ne.s32.totalorder %s77, %s93
      %p95 = scmp.eq.s32.totalorder %s17, 0
      %p96 = por %p94, %p95
      %p97 = scmp.le.s32.totalorder 1, %s11
      %p98 = scmp.lt.s32.totalorder %s11, 7
      %p99 = pnand %p97, %p98
      %p100 = pneg %p99
      // Predicated region
      $region9: #{tpu_custom_call.1} parent=5 // pred_check
        _
      $region10: #{tpu_custom_call.1} parent=5 // pred_check_branch
        %102 = sbr.rel (%p99) target = $region12
      $region11: #{tpu_custom_call.1} parent=5 // pred_region
        %s103 = ssub.s32 %s11, 1
      $region12: #{tpu_custom_call.1} parent=5 // pred_fallthru
        _
      %p104 = scmp.lt.s32.totalorder %s11, 6
      // Predicated region
      $region13: #{tpu_custom_call.1} parent=5 // pred_check
        %p105 = pneg %p104
      $region14: #{tpu_custom_call.1} parent=5 // pred_check_branch
        %107 = sbr.rel (%p105) target = $region16
      $region15: #{tpu_custom_call.1} parent=5 // pred_region
        // Predicated region
        $region17: #{tpu_custom_call.1} parent=15 // pred_check
          %p108 = pneg %p31
        $region18: #{tpu_custom_call.1} parent=15 // pred_check_branch
          %110 = sbr.rel (%p108) target = $region20
        $region19: #{tpu_custom_call.1} parent=15 // pred_region
          %p111 = scmp.lt.s32.totalorder %s11, 5
          %s112 = scalar_select %p111, %s11, 5
          %s113 = smul.addr %s112, 4
          %s114 = scalar_lea.vmem %s0, %s113
        $region20: #{tpu_custom_call.1} parent=15 // pred_fallthru
          _
        // Predicated region
        $region21: #{tpu_custom_call.1} parent=15 // pred_check
          %p115 = pneg %p57
        $region22: #{tpu_custom_call.1} parent=15 // pred_check_branch
          %117 = sbr.rel (%p115) target = $region24
        $region23: #{tpu_custom_call.1} parent=15 // pred_region
          %p118 = scmp.lt.s32.totalorder %s11, 5
          %s119 = scalar_select %p118, %s11, 5
          %s120 = smul.addr %s119, 8
          %s121 = scalar_lea.vmem %s1, %s120
        $region24: #{tpu_custom_call.1} parent=15 // pred_fallthru
          _
      $region16: #{tpu_custom_call.1} parent=5 // pred_fallthru
        _
      %p122 = scmp.le.s32.totalorder 1, %s11
      %p123 = scmp.lt.s32.totalorder %s11, 7
      %p124 = pnand %p122, %p123
      %p125 = pneg %p124
      // Predicated region
      $region25: #{tpu_custom_call.1} parent=5 // pred_check
        _
      $region26: #{tpu_custom_call.1} parent=5 // pred_check_branch
        %127 = sbr.rel (%p124) target = $region28
      $region27: #{tpu_custom_call.1} parent=5 // pred_region
        %s128 = ssub.s32 %s11, 1
        %p129 = scmp.lt.s32.totalorder %s16, 5
        %s130 = scalar_select %p129, %s16, 5
        %s131 = smul.addr %s130, 4
        %s132 = scalar_lea.vmem %s0, %s131
        %p133 = pneg %p37
        %p134 = pneg %p34
        %p135 = scmp.lt.s32.totalorder %s16, 5
        %s136 = scalar_select %p135, %s16, 5
        %s137 = smul.addr %s136, 8
        %s138 = scalar_lea.vmem %s1, %s137
        %p139 = pneg %p63
        %p140 = pneg %p60
        %p141 = pneg %p89
        %p142 = pneg %p86
        %s143 = sand.u32 %s76, 1
        %s144 = scalar_lea.sflag [#allocation3], %s143
        %s145 = sand.u32 %s76, 1
        %s146 = smul.addr %s145, 8
        %s147 = scalar_lea.vmem [#allocation2], %s146
        %p148 = scmp.lt.s32.totalorder %s16, 5
        %s149 = scalar_select %p148, %s16, 5
        %s150 = smul.addr %s149, 4
        %s151 = scalar_lea.vmem %s0, %s150
        %p152 = scmp.lt.s32.totalorder %s16, 5
        %s153 = scalar_select %p152, %s16, 5
        %s154 = smul.addr %s153, 8
        %s155 = scalar_lea.vmem %s1, %s154
        %v156 = vld [vmem:[%s151] sm:$0xf]
        %v157 = vunpack.c.l.bf16 %v156
        %v158 = vld [vmem:[%s155] sm:$0xff]
        %v159 = vlaneseq
        %v160 = vand.u32 %v159, 127
        %161 = vset.pattern.permute.xlu0 0
        %162 = vperm.xlu0 %161, %v158
        %v163 = vpop.permute.xlu0 %162
        %vm164 = vcmp.eq.s32.totalorder %v160, %v163
        %165 = vmax.xlane.f32.xlu0 %v157
        %v166 = vpop.xlane.xlu0 %165
        %v167 = vsub.f32 %v157, %v166
        %v168 = vmul.f32 %v167, 1.442695
        %v169 = vpow.pop %v168
        %v170 = vsel %vm164, %v167, 0.0
        %v171 = vsel %vm164, %v169, 0.0
        %172 = vadd.xlane.f32.xlu0 %v170
        %v173 = vpop.xlane.xlu0 %172
        %174 = vmatprep.subr.mxu0 0.0
        %175 = vmatpush1.msra.mxu0 1.0
        %176 = vmatprep.subr.mxu0 0.0
        %177 = vmatpush1.msra.mxu0 1.0
        %178 = vmatprep.subr.mxu0 0.0
        %179 = vmatpush1.msra.mxu0 1.0
        %180 = vmatprep.subr.mxu0 0.0
        %181 = vmatpush1.msra.mxu0 1.0
        %182 = vmatprep.subr.mxu0 0.0
        %183 = vmatpush1.msra.mxu0 1.0
        %184 = vmatprep.subr.mxu0 0.0
        %185 = vmatpush1.msra.mxu0 1.0
        %186 = vmatprep.subr.mxu0 0.0
        %187 = vmatpush1.msra.mxu0 1.0
        %188 = vmatprep.subr.mxu0 0.0
        %189 = vmatpush1.msra.mxu0 1.0
        %190 = vmatprep.subr.mxu0 0.0
        %191 = vmatpush1.msra.mxu0 1.0
        %192 = vmatprep.subr.mxu0 0.0
        %193 = vmatpush1.msra.mxu0 1.0
        %194 = vmatprep.subr.mxu0 0.0
        %195 = vmatpush1.msra.mxu0 1.0
        %196 = vmatprep.subr.mxu0 0.0
        %197 = vmatpush1.msra.mxu0 1.0
        %198 = vmatprep.subr.mxu0 0.0
        %199 = vmatpush1.msra.mxu0 1.0
        %200 = vmatprep.subr.mxu0 0.0
        %201 = vmatpush1.msra.mxu0 1.0
        %202 = vmatprep.subr.mxu0 0.0
        %203 = vmatpush1.msra.mxu0 1.0
        %204 = vmatprep.subr.mxu0 0.0
        %205 = vmatpush1.msra.mxu0 1.0
        %206 = vmatprep.subr.mxu0 0.0
        %207 = vmatpush1.msra.mxu0 0.0
        %208 = vmatprep.subr.mxu0 0.0
        %209 = vmatpush1.msra.mxu0 0.0
        %210 = vmatprep.subr.mxu0 0.0
        %211 = vmatpush1.msra.mxu0 0.0
        %212 = vmatprep.subr.mxu0 0.0
        %213 = vmatpush1.msra.mxu0 0.0
        %214 = vmatprep.subr.mxu0 0.0
        %215 = vmatpush1.msra.mxu0 0.0
        %216 = vmatprep.subr.mxu0 0.0
        %217 = vmatpush1.msra.mxu0 0.0
        %218 = vmatprep.subr.mxu0 0.0
        %219 = vmatpush1.msra.mxu0 0.0
        %220 = vmatprep.subr.mxu0 0.0
        %221 = vmatpush1.msra.mxu0 0.0
        %222 = vmatprep.subr.mxu0 0.0
        %223 = vmatpush1.msra.mxu0 0.0
        %224 = vmatprep.subr.mxu0 0.0
        %225 = vmatpush1.msra.mxu0 0.0
        %226 = vmatprep.subr.mxu0 0.0
        %227 = vmatpush1.msra.mxu0 0.0
        %228 = vmatprep.subr.mxu0 0.0
        %229 = vmatpush1.msra.mxu0 0.0
        %230 = vmatprep.subr.mxu0 0.0
        %231 = vmatpush1.msra.mxu0 0.0
        %232 = vmatprep.subr.mxu0 0.0
        %233 = vmatpush1.msra.mxu0 0.0
        %234 = vmatprep.subr.mxu0 0.0
        %235 = vmatpush1.msra.mxu0 0.0
        %236 = vmatprep.subr.mxu0 0.0
        %237 = vmatpush1.msra.mxu0 0.0
        %238 = vmatprep.mubr.f32.mxu0 0.0
        %v239 = vand.u32 %v169, 4294901760
        %v240 = vsub.f32 %v169, %v239
        %v241 = vand.u32 %v240, 4294901760
        %v242 = vsub.f32 %v240, %v241
        %v243 = vand.u32 %v242, 4294901760
        %244 = vmatmul.mubr.f32.gmra.mrb[0].mxu0 %v243
        %v245 = vpop.f32.mrb[0].mxu0
        %v246 = vadd.f32 0.0, %v245
        %v247 = vpop.f32.mrb[0].mxu0
        %248 = vdwg.mxu0
        %249 = vmatprep.subr.mxu0 0.0
        %250 = vmatpush1.msra.mxu0 0.0
        %251 = vmatprep.subr.mxu0 0.0
        %252 = vmatpush1.msra.mxu0 0.0
        %253 = vmatprep.subr.mxu0 0.0
        %254 = vmatpush1.msra.mxu0 0.0
        %255 = vmatprep.subr.mxu0 0.0
        %256 = vmatpush1.msra.mxu0 0.0
        %257 = vmatprep.subr.mxu0 0.0
        %258 = vmatpush1.msra.mxu0 0.0
        %259 = vmatprep.subr.mxu0 0.0
        %260 = vmatpush1.msra.mxu0 0.0
        %261 = vmatprep.subr.mxu0 0.0
        %262 = vmatpush1.msra.mxu0 0.0
        %263 = vmatprep.subr.mxu0 0.0
        %264 = vmatpush1.msra.mxu0 0.0
        %265 = vmatprep.subr.mxu0 0.0
        %266 = vmatpush1.msra.mxu0 0.0
        %267 = vmatprep.subr.mxu0 0.0
        %268 = vmatpush1.msra.mxu0 0.0
        %269 = vmatprep.subr.mxu0 0.0
        %270 = vmatpush1.msra.mxu0 0.0
        %271 = vmatprep.subr.mxu0 0.0
        %272 = vmatpush1.msra.mxu0 0.0
        %273 = vmatprep.subr.mxu0 0.0
        %274 = vmatpush1.msra.mxu0 0.0
        %275 = vmatprep.subr.mxu0 0.0
        %276 = vmatpush1.msra.mxu0 0.0
        %277 = vmatprep.subr.mxu0 0.0
        %278 = vmatpush1.msra.mxu0 0.0
        %279 = vmatprep.subr.mxu0 0.0
        %280 = vmatpush1.msra.mxu0 0.0
        %281 = vmatprep.subr.mxu0 0.0
        %282 = vmatpush1.msra.mxu0 0.0
        %283 = vmatprep.subr.mxu0 0.0
        %284 = vmatpush1.msra.mxu0 0.0
        %285 = vmatprep.subr.mxu0 0.0
        %286 = vmatpush1.msra.mxu0 0.0
        %287 = vmatprep.subr.mxu0 0.0
        %288 = vmatpush1.msra.mxu0 0.0
        %289 = vmatprep.subr.mxu0 0.0
        %290 = vmatpush1.msra.mxu0 0.0
        %291 = vmatprep.subr.mxu0 0.0
        %292 = vmatpush1.msra.mxu0 0.0
        %293 = vmatprep.subr.mxu0 0.0
        %294 = vmatpush1.msra.mxu0 0.0
        %295 = vmatprep.subr.mxu0 0.0
        %296 = vmatpush1.msra.mxu0 0.0
        %297 = vmatprep.subr.mxu0 0.0
        %298 = vmatpush1.msra.mxu0 0.0
        %299 = vmatprep.subr.mxu0 0.0
        %300 = vmatpush1.msra.mxu0 0.0
        %301 = vmatprep.subr.mxu0 0.0
        %302 = vmatpush1.msra.mxu0 0.0
        %303 = vmatprep.subr.mxu0 0.0
        %304 = vmatpush1.msra.mxu0 0.0
        %305 = vmatprep.subr.mxu0 0.0
        %306 = vmatpush1.msra.mxu0 0.0
        %307 = vmatprep.subr.mxu0 0.0
        %308 = vmatpush1.msra.mxu0 0.0
        %309 = vmatprep.subr.mxu0 0.0
        %310 = vmatpush1.msra.mxu0 0.0
        %311 = vmatprep.subr.mxu0 0.0
        %312 = vmatpush1.msra.mxu0 0.0
        %313 = vmatprep.mubr.f32.mxu0 0.0
        %v314 = vand.u32 %v169, 4294901760
        %315 = vmatmul.mubr.f32.gmra.mrb[0].mxu0 %v314
        %v316 = vpop.f32.mrb[0].mxu0
        %v317 = vadd.f32 %v246, %v316
        %v318 = vpop.f32.mrb[0].mxu0
        %319 = vdwg.mxu0
        %320 = vmatprep.subr.mxu0 0.0
        %321 = vmatpush1.msra.mxu0 0.0
        %322 = vmatprep.subr.mxu0 0.0
        %323 = vmatpush1.msra.mxu0 0.0
        %324 = vmatprep.subr.mxu0 0.0
        %325 = vmatpush1.msra.mxu0 0.0
        %326 = vmatprep.subr.mxu0 0.0
        %327 = vmatpush1.msra.mxu0 0.0
        %328 = vmatprep.subr.mxu0 0.0
        %329 = vmatpush1.msra.mxu0 0.0
        %330 = vmatprep.subr.mxu0 0.0
        %331 = vmatpush1.msra.mxu0 0.0
        %332 = vmatprep.subr.mxu0 0.0
        %333 = vmatpush1.msra.mxu0 0.0
        %334 = vmatprep.subr.mxu0 0.0
        %335 = vmatpush1.msra.mxu0 0.0
        %336 = vmatprep.subr.mxu0 0.0
        %337 = vmatpush1.msra.mxu0 0.0
        %338 = vmatprep.subr.mxu0 0.0
        %339 = vmatpush1.msra.mxu0 0.0
        %340 = vmatprep.subr.mxu0 0.0
        %341 = vmatpush1.msra.mxu0 0.0
        %342 = vmatprep.subr.mxu0 0.0
        %343 = vmatpush1.msra.mxu0 0.0
        %344 = vmatprep.subr.mxu0 0.0
        %345 = vmatpush1.msra.mxu0 0.0
        %346 = vmatprep.subr.mxu0 0.0
        %347 = vmatpush1.msra.mxu0 0.0
        %348 = vmatprep.subr.mxu0 0.0
        %349 = vmatpush1.msra.mxu0 0.0
        %350 = vmatprep.subr.mxu0 0.0
        %351 = vmatpush1.msra.mxu0 0.0
        %352 = vmatprep.subr.mxu0 0.0
        %353 = vmatpush1.msra.mxu0 0.0
        %354 = vmatprep.subr.mxu0 0.0
        %355 = vmatpush1.msra.mxu0 0.0
        %356 = vmatprep.subr.mxu0 0.0
        %357 = vmatpush1.msra.mxu0 0.0
        %358 = vmatprep.subr.mxu0 0.0
        %359 = vmatpush1.msra.mxu0 0.0
        %360 = vmatprep.subr.mxu0 0.0
        %361 = vmatpush1.msra.mxu0 0.0
        %362 = vmatprep.subr.mxu0 0.0
        %363 = vmatpush1.msra.mxu0 0.0
        %364 = vmatprep.subr.mxu0 0.0
        %365 = vmatpush1.msra.mxu0 0.0
        %366 = vmatprep.subr.mxu0 0.0
        %367 = vmatpush1.msra.mxu0 0.0
        %368 = vmatprep.subr.mxu0 0.0
        %369 = vmatpush1.msra.mxu0 0.0
        %370 = vmatprep.subr.mxu0 0.0
        %371 = vmatpush1.msra.mxu0 0.0
        %372 = vmatprep.subr.mxu0 0.0
        %373 = vmatpush1.msra.mxu0 0.0
        %374 = vmatprep.subr.mxu0 0.0
        %375 = vmatpush1.msra.mxu0 0.0
        %376 = vmatprep.subr.mxu0 0.0
        %377 = vmatpush1.msra.mxu0 0.0
        %378 = vmatprep.subr.mxu0 0.0
        %379 = vmatpush1.msra.mxu0 0.0
        %380 = vmatprep.subr.mxu0 0.0
        %381 = vmatpush1.msra.mxu0 0.0
        %382 = vmatprep.subr.mxu0 0.0
        %383 = vmatpush1.msra.mxu0 0.0
        %384 = vmatprep.mubr.f32.mxu0 0.0
        %v385 = vand.u32 %v169, 4294901760
        %v386 = vsub.f32 %v169, %v385
        %387 = vmatmul.mubr.f32.gmra.mrb[0].mxu0 %v386
        %v388 = vpop.f32.mrb[0].mxu0
        %v389 = vadd.f32 %v317, %v388
        %v390 = vpop.f32.mrb[0].mxu0
        %391 = vdwg.mxu0
        %392 = vmatprep.subr.mxu0 0.0
        %393 = vmatpush1.msra.mxu0 1.0
        %394 = vmatprep.subr.mxu0 0.0
        %395 = vmatpush1.msra.mxu0 1.0
        %396 = vmatprep.subr.mxu0 0.0
        %397 = vmatpush1.msra.mxu0 1.0
        %398 = vmatprep.subr.mxu0 0.0
        %399 = vmatpush1.msra.mxu0 1.0
        %400 = vmatprep.subr.mxu0 0.0
        %401 = vmatpush1.msra.mxu0 1.0
        %402 = vmatprep.subr.mxu0 0.0
        %403 = vmatpush1.msra.mxu0 1.0
        %404 = vmatprep.subr.mxu0 0.0
        %405 = vmatpush1.msra.mxu0 1.0
        %406 = vmatprep.subr.mxu0 0.0
        %407 = vmatpush1.msra.mxu0 1.0
        %408 = vmatprep.subr.mxu0 0.0
        %409 = vmatpush1.msra.mxu0 1.0
        %410 = vmatprep.subr.mxu0 0.0
        %411 = vmatpush1.msra.mxu0 1.0
        %412 = vmatprep.subr.mxu0 0.0
        %413 = vmatpush1.msra.mxu0 1.0
        %414 = vmatprep.subr.mxu0 0.0
        %415 = vmatpush1.msra.mxu0 1.0
        %416 = vmatprep.subr.mxu0 0.0
        %417 = vmatpush1.msra.mxu0 1.0
        %418 = vmatprep.subr.mxu0 0.0
        %419 = vmatpush1.msra.mxu0 1.0
        %420 = vmatprep.subr.mxu0 0.0
        %421 = vmatpush1.msra.mxu0 1.0
        %422 = vmatprep.subr.mxu0 0.0
        %423 = vmatpush1.msra.mxu0 1.0
        %424 = vmatprep.subr.mxu0 0.0
        %425 = vmatpush1.msra.mxu0 0.0
        %426 = vmatprep.subr.mxu0 0.0
        %427 = vmatpush1.msra.mxu0 0.0
        %428 = vmatprep.subr.mxu0 0.0
        %429 = vmatpush1.msra.mxu0 0.0
        %430 = vmatprep.subr.mxu0 0.0
        %431 = vmatpush1.msra.mxu0 0.0
        %432 = vmatprep.subr.mxu0 0.0
        %433 = vmatpush1.msra.mxu0 0.0
        %434 = vmatprep.subr.mxu0 0.0
        %435 = vmatpush1.msra.mxu0 0.0
        %436 = vmatprep.subr.mxu0 0.0
        %437 = vmatpush1.msra.mxu0 0.0
        %438 = vmatprep.subr.mxu0 0.0
        %439 = vmatpush1.msra.mxu0 0.0
        %440 = vmatprep.subr.mxu0 0.0
        %441 = vmatpush1.msra.mxu0 0.0
        %442 = vmatprep.subr.mxu0 0.0
        %443 = vmatpush1.msra.mxu0 0.0
        %444 = vmatprep.subr.mxu0 0.0
        %445 = vmatpush1.msra.mxu0 0.0
        %446 = vmatprep.subr.mxu0 0.0
        %447 = vmatpush1.msra.mxu0 0.0
        %448 = vmatprep.subr.mxu0 0.0
        %449 = vmatpush1.msra.mxu0 0.0
        %450 = vmatprep.subr.mxu0 0.0
        %451 = vmatpush1.msra.mxu0 0.0
        %452 = vmatprep.subr.mxu0 0.0
        %453 = vmatpush1.msra.mxu0 0.0
        %454 = vmatprep.subr.mxu0 0.0
        %455 = vmatpush1.msra.mxu0 0.0
        %456 = vmatprep.mubr.f32.mxu0 0.0
        %v457 = vand.u32 %v169, 4294901760
        %v458 = vsub.f32 %v169, %v457
        %v459 = vand.u32 %v458, 4294901760
        %460 = vmatmul.mubr.f32.gmra.mrb[0].mxu0 %v459
        %v461 = vpop.f32.mrb[0].mxu0
        %v462 = vadd.f32 %v389, %v461
        %v463 = vpop.f32.mrb[0].mxu0
        %464 = vdwg.mxu0
        %465 = vmatprep.subr.mxu0 0.0
        %466 = vmatpush1.msra.mxu0 0.0
        %467 = vmatprep.subr.mxu0 0.0
        %468 = vmatpush1.msra.mxu0 0.0
        %469 = vmatprep.subr.mxu0 0.0
        %470 = vmatpush1.msra.mxu0 0.0
        %471 = vmatprep.subr.mxu0 0.0
        %472 = vmatpush1.msra.mxu0 0.0
        %473 = vmatprep.subr.mxu0 0.0
        %474 = vmatpush1.msra.mxu0 0.0
        %475 = vmatprep.subr.mxu0 0.0
        %476 = vmatpush1.msra.mxu0 0.0
        %477 = vmatprep.subr.mxu0 0.0
        %478 = vmatpush1.msra.mxu0 0.0
        %479 = vmatprep.subr.mxu0 0.0
        %480 = vmatpush1.msra.mxu0 0.0
        %481 = vmatprep.subr.mxu0 0.0
        %482 = vmatpush1.msra.mxu0 0.0
        %483 = vmatprep.subr.mxu0 0.0
        %484 = vmatpush1.msra.mxu0 0.0
        %485 = vmatprep.subr.mxu0 0.0
        %486 = vmatpush1.msra.mxu0 0.0
        %487 = vmatprep.subr.mxu0 0.0
        %488 = vmatpush1.msra.mxu0 0.0
        %489 = vmatprep.subr.mxu0 0.0
        %490 = vmatpush1.msra.mxu0 0.0
        %491 = vmatprep.subr.mxu0 0.0
        %492 = vmatpush1.msra.mxu0 0.0
        %493 = vmatprep.subr.mxu0 0.0
        %494 = vmatpush1.msra.mxu0 0.0
        %495 = vmatprep.subr.mxu0 0.0
        %496 = vmatpush1.msra.mxu0 0.0
        %497 = vmatprep.subr.mxu0 0.0
        %498 = vmatpush1.msra.mxu0 0.0
        %499 = vmatprep.subr.mxu0 0.0
        %500 = vmatpush1.msra.mxu0 0.0
        %501 = vmatprep.subr.mxu0 0.0
        %502 = vmatpush1.msra.mxu0 0.0
        %503 = vmatprep.subr.mxu0 0.0
        %504 = vmatpush1.msra.mxu0 0.0
        %505 = vmatprep.subr.mxu0 0.0
        %506 = vmatpush1.msra.mxu0 0.0
        %507 = vmatprep.subr.mxu0 0.0
        %508 = vmatpush1.msra.mxu0 0.0
        %509 = vmatprep.subr.mxu0 0.0
        %510 = vmatpush1.msra.mxu0 0.0
        %511 = vmatprep.subr.mxu0 0.0
        %512 = vmatpush1.msra.mxu0 0.0
        %513 = vmatprep.subr.mxu0 0.0
        %514 = vmatpush1.msra.mxu0 0.0
        %515 = vmatprep.subr.mxu0 0.0
        %516 = vmatpush1.msra.mxu0 0.0
        %517 = vmatprep.subr.mxu0 0.0
        %518 = vmatpush1.msra.mxu0 0.0
        %519 = vmatprep.subr.mxu0 0.0
        %520 = vmatpush1.msra.mxu0 0.0
        %521 = vmatprep.subr.mxu0 0.0
        %522 = vmatpush1.msra.mxu0 0.0
        %523 = vmatprep.subr.mxu0 0.0
        %524 = vmatpush1.msra.mxu0 0.0
        %525 = vmatprep.subr.mxu0 0.0
        %526 = vmatpush1.msra.mxu0 0.0
        %527 = vmatprep.subr.mxu0 0.0
        %528 = vmatpush1.msra.mxu0 0.0
        %529 = vmatprep.mubr.f32.mxu0 0.0
        %v530 = vand.u32 %v169, 4294901760
        %531 = vmatmul.mubr.f32.gmra.mrb[0].mxu0 %v530
        %v532 = vpop.f32.mrb[0].mxu0
        %v533 = vadd.f32 %v462, %v532
        %v534 = vpop.f32.mrb[0].mxu0
        %535 = vdwg.mxu0
        %536 = vmatprep.subr.mxu0 0.0
        %537 = vmatpush1.msra.mxu0 1.0
        %538 = vmatprep.subr.mxu0 0.0
        %539 = vmatpush1.msra.mxu0 1.0
        %540 = vmatprep.subr.mxu0 0.0
        %541 = vmatpush1.msra.mxu0 1.0
        %542 = vmatprep.subr.mxu0 0.0
        %543 = vmatpush1.msra.mxu0 1.0
        %544 = vmatprep.subr.mxu0 0.0
        %545 = vmatpush1.msra.mxu0 1.0
        %546 = vmatprep.subr.mxu0 0.0
        %547 = vmatpush1.msra.mxu0 1.0
        %548 = vmatprep.subr.mxu0 0.0
        %549 = vmatpush1.msra.mxu0 1.0
        %550 = vmatprep.subr.mxu0 0.0
        %551 = vmatpush1.msra.mxu0 1.0
        %552 = vmatprep.subr.mxu0 0.0
        %553 = vmatpush1.msra.mxu0 1.0
        %554 = vmatprep.subr.mxu0 0.0
        %555 = vmatpush1.msra.mxu0 1.0
        %556 = vmatprep.subr.mxu0 0.0
        %557 = vmatpush1.msra.mxu0 1.0
        %558 = vmatprep.subr.mxu0 0.0
        %559 = vmatpush1.msra.mxu0 1.0
        %560 = vmatprep.subr.mxu0 0.0
        %561 = vmatpush1.msra.mxu0 1.0
        %562 = vmatprep.subr.mxu0 0.0
        %563 = vmatpush1.msra.mxu0 1.0
        %564 = vmatprep.subr.mxu0 0.0
        %565 = vmatpush1.msra.mxu0 1.0
        %566 = vmatprep.subr.mxu0 0.0
        %567 = vmatpush1.msra.mxu0 1.0
        %568 = vmatprep.subr.mxu0 0.0
        %569 = vmatpush1.msra.mxu0 0.0
        %570 = vmatprep.subr.mxu0 0.0
        %571 = vmatpush1.msra.mxu0 0.0
        %572 = vmatprep.subr.mxu0 0.0
        %573 = vmatpush1.msra.mxu0 0.0
        %574 = vmatprep.subr.mxu0 0.0
        %575 = vmatpush1.msra.mxu0 0.0
        %576 = vmatprep.subr.mxu0 0.0
        %577 = vmatpush1.msra.mxu0 0.0
        %578 = vmatprep.subr.mxu0 0.0
        %579 = vmatpush1.msra.mxu0 0.0
        %580 = vmatprep.subr.mxu0 0.0
        %581 = vmatpush1.msra.mxu0 0.0
        %582 = vmatprep.subr.mxu0 0.0
        %583 = vmatpush1.msra.mxu0 0.0
        %584 = vmatprep.subr.mxu0 0.0
        %585 = vmatpush1.msra.mxu0 0.0
        %586 = vmatprep.subr.mxu0 0.0
        %587 = vmatpush1.msra.mxu0 0.0
        %588 = vmatprep.subr.mxu0 0.0
        %589 = vmatpush1.msra.mxu0 0.0
        %590 = vmatprep.subr.mxu0 0.0
        %591 = vmatpush1.msra.mxu0 0.0
        %592 = vmatprep.subr.mxu0 0.0
        %593 = vmatpush1.msra.mxu0 0.0
        %594 = vmatprep.subr.mxu0 0.0
        %595 = vmatpush1.msra.mxu0 0.0
        %596 = vmatprep.subr.mxu0 0.0
        %597 = vmatpush1.msra.mxu0 0.0
        %598 = vmatprep.subr.mxu0 0.0
        %599 = vmatpush1.msra.mxu0 0.0
        %600 = vmatprep.mubr.f32.mxu0 0.0
        %v601 = vand.u32 %v169, 4294901760
        %602 = vmatmul.mubr.f32.gmra.mrb[0].mxu0 %v601
        %v603 = vpop.f32.mrb[0].mxu0
        %v604 = vadd.f32 %v533, %v603
        %v605 = vpop.f32.mrb[0].mxu0
        %606 = vdwg.mxu0
        %607 = vmatprep.subr.mxu0 0.0
        %608 = vmatpush1.msra.mxu0 1.0
        %609 = vmatprep.subr.mxu0 0.0
        %610 = vmatpush1.msra.mxu0 1.0
        %611 = vmatprep.subr.mxu0 0.0
        %612 = vmatpush1.msra.mxu0 1.0
        %613 = vmatprep.subr.mxu0 0.0
        %614 = vmatpush1.msra.mxu0 1.0
        %615 = vmatprep.subr.mxu0 0.0
        %616 = vmatpush1.msra.mxu0 1.0
        %617 = vmatprep.subr.mxu0 0.0
        %618 = vmatpush1.msra.mxu0 1.0
        %619 = vmatprep.subr.mxu0 0.0
        %620 = vmatpush1.msra.mxu0 1.0
        %621 = vmatprep.subr.mxu0 0.0
        %622 = vmatpush1.msra.mxu0 1.0
        %623 = vmatprep.subr.mxu0 0.0
        %624 = vmatpush1.msra.mxu0 1.0
        %625 = vmatprep.subr.mxu0 0.0
        %626 = vmatpush1.msra.mxu0 1.0
        %627 = vmatprep.subr.mxu0 0.0
        %628 = vmatpush1.msra.mxu0 1.0
        %629 = vmatprep.subr.mxu0 0.0
        %630 = vmatpush1.msra.mxu0 1.0
        %631 = vmatprep.subr.mxu0 0.0
        %632 = vmatpush1.msra.mxu0 1.0
        %633 = vmatprep.subr.mxu0 0.0
        %634 = vmatpush1.msra.mxu0 1.0
        %635 = vmatprep.subr.mxu0 0.0
        %636 = vmatpush1.msra.mxu0 1.0
        %637 = vmatprep.subr.mxu0 0.0
        %638 = vmatpush1.msra.mxu0 1.0
        %639 = vmatprep.subr.mxu0 0.0
        %640 = vmatpush1.msra.mxu0 0.0
        %641 = vmatprep.subr.mxu0 0.0
        %642 = vmatpush1.msra.mxu0 0.0
        %643 = vmatprep.subr.mxu0 0.0
        %644 = vmatpush1.msra.mxu0 0.0
        %645 = vmatprep.subr.mxu0 0.0
        %646 = vmatpush1.msra.mxu0 0.0
        %647 = vmatprep.subr.mxu0 0.0
        %648 = vmatpush1.msra.mxu0 0.0
        %649 = vmatprep.subr.mxu0 0.0
        %650 = vmatpush1.msra.mxu0 0.0
        %651 = vmatprep.subr.mxu0 0.0
        %652 = vmatpush1.msra.mxu0 0.0
        %653 = vmatprep.subr.mxu0 0.0
        %654 = vmatpush1.msra.mxu0 0.0
        %655 = vmatprep.subr.mxu0 0.0
        %656 = vmatpush1.msra.mxu0 0.0
        %657 = vmatprep.subr.mxu0 0.0
        %658 = vmatpush1.msra.mxu0 0.0
        %659 = vmatprep.subr.mxu0 0.0
        %660 = vmatpush1.msra.mxu0 0.0
        %661 = vmatprep.subr.mxu0 0.0
        %662 = vmatpush1.msra.mxu0 0.0
        %663 = vmatprep.subr.mxu0 0.0
        %664 = vmatpush1.msra.mxu0 0.0
        %665 = vmatprep.subr.mxu0 0.0
        %666 = vmatpush1.msra.mxu0 0.0
        %667 = vmatprep.subr.mxu0 0.0
        %668 = vmatpush1.msra.mxu0 0.0
        %669 = vmatprep.subr.mxu0 0.0
        %670 = vmatpush1.msra.mxu0 0.0
        %671 = vmatprep.mubr.f32.mxu0 0.0
        %v672 = vand.u32 %v167, 4294901760
        %v673 = vsub.f32 %v167, %v672
        %v674 = vand.u32 %v673, 4294901760
        %v675 = vsub.f32 %v673, %v674
        %v676 = vand.u32 %v675, 4294901760
        %677 = vmatmul.mubr.f32.gmra.mrb[0].mxu0 %v676
        %v678 = vpop.f32.mrb[0].mxu0
        %v679 = vadd.f32 0.0, %v678
        %v680 = vpop.f32.mrb[0].mxu0
        %681 = vdwg.mxu0
        %682 = vmatprep.subr.mxu0 0.0
        %683 = vmatpush1.msra.mxu0 0.0
        %684 = vmatprep.subr.mxu0 0.0
        %685 = vmatpush1.msra.mxu0 0.0
        %686 = vmatprep.subr.mxu0 0.0
        %687 = vmatpush1.msra.mxu0 0.0
        %688 = vmatprep.subr.mxu0 0.0
        %689 = vmatpush1.msra.mxu0 0.0
        %690 = vmatprep.subr.mxu0 0.0
        %691 = vmatpush1.msra.mxu0 0.0
        %692 = vmatprep.subr.mxu0 0.0
        %693 = vmatpush1.msra.mxu0 0.0
        %694 = vmatprep.subr.mxu0 0.0
        %695 = vmatpush1.msra.mxu0 0.0
        %696 = vmatprep.subr.mxu0 0.0
        %697 = vmatpush1.msra.mxu0 0.0
        %698 = vmatprep.subr.mxu0 0.0
        %699 = vmatpush1.msra.mxu0 0.0
        %700 = vmatprep.subr.mxu0 0.0
        %701 = vmatpush1.msra.mxu0 0.0
        %702 = vmatprep.subr.mxu0 0.0
        %703 = vmatpush1.msra.mxu0 0.0
        %704 = vmatprep.subr.mxu0 0.0
        %705 = vmatpush1.msra.mxu0 0.0
        %706 = vmatprep.subr.mxu0 0.0
        %707 = vmatpush1.msra.mxu0 0.0
        %708 = vmatprep.subr.mxu0 0.0
        %709 = vmatpush1.msra.mxu0 0.0
        %710 = vmatprep.subr.mxu0 0.0
        %711 = vmatpush1.msra.mxu0 0.0
        %712 = vmatprep.subr.mxu0 0.0
        %713 = vmatpush1.msra.mxu0 0.0
        %714 = vmatprep.subr.mxu0 0.0
        %715 = vmatpush1.msra.mxu0 0.0
        %716 = vmatprep.subr.mxu0 0.0
        %717 = vmatpush1.msra.mxu0 0.0
        %718 = vmatprep.subr.mxu0 0.0
        %719 = vmatpush1.msra.mxu0 0.0
        %720 = vmatprep.subr.mxu0 0.0
        %721 = vmatpush1.msra.mxu0 0.0
        %722 = vmatprep.subr.mxu0 0.0
        %723 = vmatpush1.msra.mxu0 0.0
        %724 = vmatprep.subr.mxu0 0.0
        %725 = vmatpush1.msra.mxu0 0.0
        %726 = vmatprep.subr.mxu0 0.0
        %727 = vmatpush1.msra.mxu0 0.0
        %728 = vmatprep.subr.mxu0 0.0
        %729 = vmatpush1.msra.mxu0 0.0
        %730 = vmatprep.subr.mxu0 0.0
        %731 = vmatpush1.msra.mxu0 0.0
        %732 = vmatprep.subr.mxu0 0.0
        %733 = vmatpush1.msra.mxu0 0.0
        %734 = vmatprep.subr.mxu0 0.0
        %735 = vmatpush1.msra.mxu0 0.0
        %736 = vmatprep.subr.mxu0 0.0
        %737 = vmatpush1.msra.mxu0 0.0
        %738 = vmatprep.subr.mxu0 0.0
        %739 = vmatpush1.msra.mxu0 0.0
        %740 = vmatprep.subr.mxu0 0.0
        %741 = vmatpush1.msra.mxu0 0.0
        %742 = vmatprep.subr.mxu0 0.0
        %743 = vmatpush1.msra.mxu0 0.0
        %744 = vmatprep.subr.mxu0 0.0
        %745 = vmatpush1.msra.mxu0 0.0
        %746 = vmatprep.mubr.f32.mxu0 0.0
        %v747 = vand.u32 %v167, 4294901760
        %748 = vmatmul.mubr.f32.gmra.mrb[0].mxu0 %v747
        %v749 = vpop.f32.mrb[0].mxu0
        %v750 = vadd.f32 %v679, %v749
        %v751 = vpop.f32.mrb[0].mxu0
        %752 = vdwg.mxu0
        %753 = vmatprep.subr.mxu0 0.0
        %754 = vmatpush1.msra.mxu0 0.0
        %755 = vmatprep.subr.mxu0 0.0
        %756 = vmatpush1.msra.mxu0 0.0
        %757 = vmatprep.subr.mxu0 0.0
        %758 = vmatpush1.msra.mxu0 0.0
        %759 = vmatprep.subr.mxu0 0.0
        %760 = vmatpush1.msra.mxu0 0.0
        %761 = vmatprep.subr.mxu0 0.0
        %762 = vmatpush1.msra.mxu0 0.0
        %763 = vmatprep.subr.mxu0 0.0
        %764 = vmatpush1.msra.mxu0 0.0
        %765 = vmatprep.subr.mxu0 0.0
        %766 = vmatpush1.msra.mxu0 0.0
        %767 = vmatprep.subr.mxu0 0.0
        %768 = vmatpush1.msra.mxu0 0.0
        %769 = vmatprep.subr.mxu0 0.0
        %770 = vmatpush1.msra.mxu0 0.0
        %771 = vmatprep.subr.mxu0 0.0
        %772 = vmatpush1.msra.mxu0 0.0
        %773 = vmatprep.subr.mxu0 0.0
        %774 = vmatpush1.msra.mxu0 0.0
        %775 = vmatprep.subr.mxu0 0.0
        %776 = vmatpush1.msra.mxu0 0.0
        %777 = vmatprep.subr.mxu0 0.0
        %778 = vmatpush1.msra.mxu0 0.0
        %779 = vmatprep.subr.mxu0 0.0
        %780 = vmatpush1.msra.mxu0 0.0
        %781 = vmatprep.subr.mxu0 0.0
        %782 = vmatpush1.msra.mxu0 0.0
        %783 = vmatprep.subr.mxu0 0.0
        %784 = vmatpush1.msra.mxu0 0.0
        %785 = vmatprep.subr.mxu0 0.0
        %786 = vmatpush1.msra.mxu0 0.0
        %787 = vmatprep.subr.mxu0 0.0
        %788 = vmatpush1.msra.mxu0 0.0
        %789 = vmatprep.subr.mxu0 0.0
        %790 = vmatpush1.msra.mxu0 0.0
        %791 = vmatprep.subr.mxu0 0.0
        %792 = vmatpush1.msra.mxu0 0.0
        %793 = vmatprep.subr.mxu0 0.0
        %794 = vmatpush1.msra.mxu0 0.0
        %795 = vmatprep.subr.mxu0 0.0
        %796 = vmatpush1.msra.mxu0 0.0
        %797 = vmatprep.subr.mxu0 0.0
        %798 = vmatpush1.msra.mxu0 0.0
        %799 = vmatprep.subr.mxu0 0.0
        %800 = vmatpush1.msra.mxu0 0.0
        %801 = vmatprep.subr.mxu0 0.0
        %802 = vmatpush1.msra.mxu0 0.0
        %803 = vmatprep.subr.mxu0 0.0
        %804 = vmatpush1.msra.mxu0 0.0
        %805 = vmatprep.subr.mxu0 0.0
        %806 = vmatpush1.msra.mxu0 0.0
        %807 = vmatprep.subr.mxu0 0.0
        %808 = vmatpush1.msra.mxu0 0.0
        %809 = vmatprep.subr.mxu0 0.0
        %810 = vmatpush1.msra.mxu0 0.0
        %811 = vmatprep.subr.mxu0 0.0
        %812 = vmatpush1.msra.mxu0 0.0
        %813 = vmatprep.subr.mxu0 0.0
        %814 = vmatpush1.msra.mxu0 0.0
        %815 = vmatprep.subr.mxu0 0.0
        %816 = vmatpush1.msra.mxu0 0.0
        %817 = vmatprep.mubr.f32.mxu0 0.0
        %v818 = vand.u32 %v167, 4294901760
        %v819 = vsub.f32 %v167, %v818
        %820 = vmatmul.mubr.f32.gmra.mrb[0].mxu0 %v819
        %v821 = vpop.f32.mrb[0].mxu0
        %v822 = vadd.f32 %v750, %v821
        %v823 = vpop.f32.mrb[0].mxu0
        %824 = vdwg.mxu0
        %825 = vmatprep.subr.mxu0 0.0
        %826 = vmatpush1.msra.mxu0 1.0
        %827 = vmatprep.subr.mxu0 0.0
        %828 = vmatpush1.msra.mxu0 1.0
        %829 = vmatprep.subr.mxu0 0.0
        %830 = vmatpush1.msra.mxu0 1.0
        %831 = vmatprep.subr.mxu0 0.0
        %832 = vmatpush1.msra.mxu0 1.0
        %833 = vmatprep.subr.mxu0 0.0
        %834 = vmatpush1.msra.mxu0 1.0
        %835 = vmatprep.subr.mxu0 0.0
        %836 = vmatpush1.msra.mxu0 1.0
        %837 = vmatprep.subr.mxu0 0.0
        %838 = vmatpush1.msra.mxu0 1.0
        %839 = vmatprep.subr.mxu0 0.0
        %840 = vmatpush1.msra.mxu0 1.0
        %841 = vmatprep.subr.mxu0 0.0
        %842 = vmatpush1.msra.mxu0 1.0
        %843 = vmatprep.subr.mxu0 0.0
        %844 = vmatpush1.msra.mxu0 1.0
        %845 = vmatprep.subr.mxu0 0.0
        %846 = vmatpush1.msra.mxu0 1.0
        %847 = vmatprep.subr.mxu0 0.0
        %848 = vmatpush1.msra.mxu0 1.0
        %849 = vmatprep.subr.mxu0 0.0
        %850 = vmatpush1.msra.mxu0 1.0
        %851 = vmatprep.subr.mxu0 0.0
        %852 = vmatpush1.msra.mxu0 1.0
        %853 = vmatprep.subr.mxu0 0.0
        %854 = vmatpush1.msra.mxu0 1.0
        %855 = vmatprep.subr.mxu0 0.0
        %856 = vmatpush1.msra.mxu0 1.0
        %857 = vmatprep.subr.mxu0 0.0
        %858 = vmatpush1.msra.mxu0 0.0
        %859 = vmatprep.subr.mxu0 0.0
        %860 = vmatpush1.msra.mxu0 0.0
        %861 = vmatprep.subr.mxu0 0.0
        %862 = vmatpush1.msra.mxu0 0.0
        %863 = vmatprep.subr.mxu0 0.0
        %864 = vmatpush1.msra.mxu0 0.0
        %865 = vmatprep.subr.mxu0 0.0
        %866 = vmatpush1.msra.mxu0 0.0
        %867 = vmatprep.subr.mxu0 0.0
        %868 = vmatpush1.msra.mxu0 0.0
        %869 = vmatprep.subr.mxu0 0.0
        %870 = vmatpush1.msra.mxu0 0.0
        %871 = vmatprep.subr.mxu0 0.0
        %872 = vmatpush1.msra.mxu0 0.0
        %873 = vmatprep.subr.mxu0 0.0
        %874 = vmatpush1.msra.mxu0 0.0
        %875 = vmatprep.subr.mxu0 0.0
        %876 = vmatpush1.msra.mxu0 0.0
        %877 = vmatprep.subr.mxu0 0.0
        %878 = vmatpush1.msra.mxu0 0.0
        %879 = vmatprep.subr.mxu0 0.0
        %880 = vmatpush1.msra.mxu0 0.0
        %881 = vmatprep.subr.mxu0 0.0
        %882 = vmatpush1.msra.mxu0 0.0
        %883 = vmatprep.subr.mxu0 0.0
        %884 = vmatpush1.msra.mxu0 0.0
        %885 = vmatprep.subr.mxu0 0.0
        %886 = vmatpush1.msra.mxu0 0.0
        %887 = vmatprep.subr.mxu0 0.0
        %888 = vmatpush1.msra.mxu0 0.0
        %889 = vmatprep.mubr.f32.mxu0 0.0
        %v890 = vand.u32 %v167, 4294901760
        %v891 = vsub.f32 %v167, %v890
        %v892 = vand.u32 %v891, 4294901760
        %893 = vmatmul.mubr.f32.gmra.mrb[0].mxu0 %v892
        %v894 = vpop.f32.mrb[0].mxu0
        %v895 = vadd.f32 %v822, %v894
        %v896 = vpop.f32.mrb[0].mxu0
        %897 = vdwg.mxu0
        %898 = vmatprep.subr.mxu0 0.0
        %899 = vmatpush1.msra.mxu0 0.0
        %900 = vmatprep.subr.mxu0 0.0
        %901 = vmatpush1.msra.mxu0 0.0
        %902 = vmatprep.subr.mxu0 0.0
        %903 = vmatpush1.msra.mxu0 0.0
        %904 = vmatprep.subr.mxu0 0.0
        %905 = vmatpush1.msra.mxu0 0.0
        %906 = vmatprep.subr.mxu0 0.0
        %907 = vmatpush1.msra.mxu0 0.0
        %908 = vmatprep.subr.mxu0 0.0
        %909 = vmatpush1.msra.mxu0 0.0
        %910 = vmatprep.subr.mxu0 0.0
        %911 = vmatpush1.msra.mxu0 0.0
        %912 = vmatprep.subr.mxu0 0.0
        %913 = vmatpush1.msra.mxu0 0.0
        %914 = vmatprep.subr.mxu0 0.0
        %915 = vmatpush1.msra.mxu0 0.0
        %916 = vmatprep.subr.mxu0 0.0
        %917 = vmatpush1.msra.mxu0 0.0
        %918 = vmatprep.subr.mxu0 0.0
        %919 = vmatpush1.msra.mxu0 0.0
        %920 = vmatprep.subr.mxu0 0.0
        %921 = vmatpush1.msra.mxu0 0.0
        %922 = vmatprep.subr.mxu0 0.0
        %923 = vmatpush1.msra.mxu0 0.0
        %924 = vmatprep.subr.mxu0 0.0
        %925 = vmatpush1.msra.mxu0 0.0
        %926 = vmatprep.subr.mxu0 0.0
        %927 = vmatpush1.msra.mxu0 0.0
        %928 = vmatprep.subr.mxu0 0.0
        %929 = vmatpush1.msra.mxu0 0.0
        %930 = vmatprep.subr.mxu0 0.0
        %931 = vmatpush1.msra.mxu0 0.0
        %932 = vmatprep.subr.mxu0 0.0
        %933 = vmatpush1.msra.mxu0 0.0
        %934 = vmatprep.subr.mxu0 0.0
        %935 = vmatpush1.msra.mxu0 0.0
        %936 = vmatprep.subr.mxu0 0.0
        %937 = vmatpush1.msra.mxu0 0.0
        %938 = vmatprep.subr.mxu0 0.0
        %939 = vmatpush1.msra.mxu0 0.0
        %940 = vmatprep.subr.mxu0 0.0
        %941 = vmatpush1.msra.mxu0 0.0
        %942 = vmatprep.subr.mxu0 0.0
        %943 = vmatpush1.msra.mxu0 0.0
        %944 = vmatprep.subr.mxu0 0.0
        %945 = vmatpush1.msra.mxu0 0.0
        %946 = vmatprep.subr.mxu0 0.0
        %947 = vmatpush1.msra.mxu0 0.0
        %948 = vmatprep.subr.mxu0 0.0
        %949 = vmatpush1.msra.mxu0 0.0
        %950 = vmatprep.subr.mxu0 0.0
        %951 = vmatpush1.msra.mxu0 0.0
        %952 = vmatprep.subr.mxu0 0.0
        %953 = vmatpush1.msra.mxu0 0.0
        %954 = vmatprep.subr.mxu0 0.0
        %955 = vmatpush1.msra.mxu0 0.0
        %956 = vmatprep.subr.mxu0 0.0
        %957 = vmatpush1.msra.mxu0 0.0
        %958 = vmatprep.subr.mxu0 0.0
        %959 = vmatpush1.msra.mxu0 0.0
        %960 = vmatprep.subr.mxu0 0.0
        %961 = vmatpush1.msra.mxu0 0.0
        %962 = vmatprep.mubr.f32.mxu0 0.0
        %v963 = vand.u32 %v167, 4294901760
        %964 = vmatmul.mubr.f32.gmra.mrb[0].mxu0 %v963
        %v965 = vpop.f32.mrb[0].mxu0
        %v966 = vadd.f32 %v895, %v965
        %v967 = vpop.f32.mrb[0].mxu0
        %968 = vdwg.mxu0
        %969 = vmatprep.subr.mxu0 0.0
        %970 = vmatpush1.msra.mxu0 1.0
        %971 = vmatprep.subr.mxu0 0.0
        %972 = vmatpush1.msra.mxu0 1.0
        %973 = vmatprep.subr.mxu0 0.0
        %974 = vmatpush1.msra.mxu0 1.0
        %975 = vmatprep.subr.mxu0 0.0
        %976 = vmatpush1.msra.mxu0 1.0
        %977 = vmatprep.subr.mxu0 0.0
        %978 = vmatpush1.msra.mxu0 1.0
        %979 = vmatprep.subr.mxu0 0.0
        %980 = vmatpush1.msra.mxu0 1.0
        %981 = vmatprep.subr.mxu0 0.0
        %982 = vmatpush1.msra.mxu0 1.0
        %983 = vmatprep.subr.mxu0 0.0
        %984 = vmatpush1.msra.mxu0 1.0
        %985 = vmatprep.subr.mxu0 0.0
        %986 = vmatpush1.msra.mxu0 1.0
        %987 = vmatprep.subr.mxu0 0.0
        %988 = vmatpush1.msra.mxu0 1.0
        %989 = vmatprep.subr.mxu0 0.0
        %990 = vmatpush1.msra.mxu0 1.0
        %991 = vmatprep.subr.mxu0 0.0
        %992 = vmatpush1.msra.mxu0 1.0
        %993 = vmatprep.subr.mxu0 0.0
        %994 = vmatpush1.msra.mxu0 1.0
        %995 = vmatprep.subr.mxu0 0.0
        %996 = vmatpush1.msra.mxu0 1.0
        %997 = vmatprep.subr.mxu0 0.0
        %998 = vmatpush1.msra.mxu0 1.0
        %999 = vmatprep.subr.mxu0 0.0
        %1000 = vmatpush1.msra.mxu0 1.0
        %1001 = vmatprep.subr.mxu0 0.0
        %1002 = vmatpush1.msra.mxu0 0.0
        %1003 = vmatprep.subr.mxu0 0.0
        %1004 = vmatpush1.msra.mxu0 0.0
        %1005 = vmatprep.subr.mxu0 0.0
        %1006 = vmatpush1.msra.mxu0 0.0
        %1007 = vmatprep.subr.mxu0 0.0
        %1008 = vmatpush1.msra.mxu0 0.0
        %1009 = vmatprep.subr.mxu0 0.0
        %1010 = vmatpush1.msra.mxu0 0.0
        %1011 = vmatprep.subr.mxu0 0.0
        %1012 = vmatpush1.msra.mxu0 0.0
        %1013 = vmatprep.subr.mxu0 0.0
        %1014 = vmatpush1.msra.mxu0 0.0
        %1015 = vmatprep.subr.mxu0 0.0
        %1016 = vmatpush1.msra.mxu0 0.0
        %1017 = vmatprep.subr.mxu0 0.0
        %1018 = vmatpush1.msra.mxu0 0.0
        %1019 = vmatprep.subr.mxu0 0.0
        %1020 = vmatpush1.msra.mxu0 0.0
        %1021 = vmatprep.subr.mxu0 0.0
        %1022 = vmatpush1.msra.mxu0 0.0
        %1023 = vmatprep.subr.mxu0 0.0
        %1024 = vmatpush1.msra.mxu0 0.0
        %1025 = vmatprep.subr.mxu0 0.0
        %1026 = vmatpush1.msra.mxu0 0.0
        %1027 = vmatprep.subr.mxu0 0.0
        %1028 = vmatpush1.msra.mxu0 0.0
        %1029 = vmatprep.subr.mxu0 0.0
        %1030 = vmatpush1.msra.mxu0 0.0
        %1031 = vmatprep.subr.mxu0 0.0
        %1032 = vmatpush1.msra.mxu0 0.0
        %1033 = vmatprep.mubr.f32.mxu0 0.0
        %v1034 = vand.u32 %v167, 4294901760
        %1035 = vmatmul.mubr.f32.gmra.mrb[0].mxu0 %v1034
        %v1036 = vpop.f32.mrb[0].mxu0
        %v1037 = vadd.f32 %v966, %v1036
        %v1038 = vpop.f32.mrb[0].mxu0
        %1039 = vdwg.mxu0
        %1040 = vmatprep.subr.mxu0 0.0
        %1041 = vmatpush1.msra.mxu0 1.0
        %1042 = vmatprep.subr.mxu0 0.0
        %1043 = vmatpush1.msra.mxu0 1.0
        %1044 = vmatprep.subr.mxu0 0.0
        %1045 = vmatpush1.msra.mxu0 1.0
        %1046 = vmatprep.subr.mxu0 0.0
        %1047 = vmatpush1.msra.mxu0 1.0
        %1048 = vmatprep.subr.mxu0 0.0
        %1049 = vmatpush1.msra.mxu0 1.0
        %1050 = vmatprep.subr.mxu0 0.0
        %1051 = vmatpush1.msra.mxu0 1.0
        %1052 = vmatprep.subr.mxu0 0.0
        %1053 = vmatpush1.msra.mxu0 1.0
        %1054 = vmatprep.subr.mxu0 0.0
        %1055 = vmatpush1.msra.mxu0 1.0
        %1056 = vmatprep.subr.mxu0 0.0
        %1057 = vmatpush1.msra.mxu0 1.0
        %1058 = vmatprep.subr.mxu0 0.0
        %1059 = vmatpush1.msra.mxu0 1.0
        %1060 = vmatprep.subr.mxu0 0.0
        %1061 = vmatpush1.msra.mxu0 1.0
        %1062 = vmatprep.subr.mxu0 0.0
        %1063 = vmatpush1.msra.mxu0 1.0
        %1064 = vmatprep.subr.mxu0 0.0
        %1065 = vmatpush1.msra.mxu0 1.0
        %1066 = vmatprep.subr.mxu0 0.0
        %1067 = vmatpush1.msra.mxu0 1.0
        %1068 = vmatprep.subr.mxu0 0.0
        %1069 = vmatpush1.msra.mxu0 1.0
        %1070 = vmatprep.subr.mxu0 0.0
        %1071 = vmatpush1.msra.mxu0 1.0
        %1072 = vmatprep.subr.mxu0 0.0
        %1073 = vmatpush1.msra.mxu0 0.0
        %1074 = vmatprep.subr.mxu0 0.0
        %1075 = vmatpush1.msra.mxu0 0.0
        %1076 = vmatprep.subr.mxu0 0.0
        %1077 = vmatpush1.msra.mxu0 0.0
        %1078 = vmatprep.subr.mxu0 0.0
        %1079 = vmatpush1.msra.mxu0 0.0
        %1080 = vmatprep.subr.mxu0 0.0
        %1081 = vmatpush1.msra.mxu0 0.0
        %1082 = vmatprep.subr.mxu0 0.0
        %1083 = vmatpush1.msra.mxu0 0.0
        %1084 = vmatprep.subr.mxu0 0.0
        %1085 = vmatpush1.msra.mxu0 0.0
        %1086 = vmatprep.subr.mxu0 0.0
        %1087 = vmatpush1.msra.mxu0 0.0
        %1088 = vmatprep.subr.mxu0 0.0
        %1089 = vmatpush1.msra.mxu0 0.0
        %1090 = vmatprep.subr.mxu0 0.0
        %1091 = vmatpush1.msra.mxu0 0.0
        %1092 = vmatprep.subr.mxu0 0.0
        %1093 = vmatpush1.msra.mxu0 0.0
        %1094 = vmatprep.subr.mxu0 0.0
        %1095 = vmatpush1.msra.mxu0 0.0
        %1096 = vmatprep.subr.mxu0 0.0
        %1097 = vmatpush1.msra.mxu0 0.0
        %1098 = vmatprep.subr.mxu0 0.0
        %1099 = vmatpush1.msra.mxu0 0.0
        %1100 = vmatprep.subr.mxu0 0.0
        %1101 = vmatpush1.msra.mxu0 0.0
        %1102 = vmatprep.subr.mxu0 0.0
        %1103 = vmatpush1.msra.mxu0 0.0
        %1104 = vmatprep.mubr.f32.mxu0 0.0
        %v1105 = vand.u32 %v171, 4294901760
        %v1106 = vsub.f32 %v171, %v1105
        %v1107 = vand.u32 %v1106, 4294901760
        %v1108 = vsub.f32 %v1106, %v1107
        %v1109 = vand.u32 %v1108, 4294901760
        %1110 = vmatmul.mubr.f32.gmra.mrb[0].mxu0 %v1109
        %v1111 = vpop.f32.mrb[0].mxu0
        %v1112 = vadd.f32 0.0, %v1111
        %v1113 = vpop.f32.mrb[0].mxu0
        %1114 = vdwg.mxu0
        %1115 = vmatprep.subr.mxu0 0.0
        %1116 = vmatpush1.msra.mxu0 0.0
        %1117 = vmatprep.subr.mxu0 0.0
        %1118 = vmatpush1.msra.mxu0 0.0
        %1119 = vmatprep.subr.mxu0 0.0
        %1120 = vmatpush1.msra.mxu0 0.0
        %1121 = vmatprep.subr.mxu0 0.0
        %1122 = vmatpush1.msra.mxu0 0.0
        %1123 = vmatprep.subr.mxu0 0.0
        %1124 = vmatpush1.msra.mxu0 0.0
        %1125 = vmatprep.subr.mxu0 0.0
        %1126 = vmatpush1.msra.mxu0 0.0
        %1127 = vmatprep.subr.mxu0 0.0
        %1128 = vmatpush1.msra.mxu0 0.0
        %1129 = vmatprep.subr.mxu0 0.0
        %1130 = vmatpush1.msra.mxu0 0.0
        %1131 = vmatprep.subr.mxu0 0.0
        %1132 = vmatpush1.msra.mxu0 0.0
        %1133 = vmatprep.subr.mxu0 0.0
        %1134 = vmatpush1.msra.mxu0 0.0
        %1135 = vmatprep.subr.mxu0 0.0
        %1136 = vmatpush1.msra.mxu0 0.0
        %1137 = vmatprep.subr.mxu0 0.0
        %1138 = vmatpush1.msra.mxu0 0.0
        %1139 = vmatprep.subr.mxu0 0.0
        %1140 = vmatpush1.msra.mxu0 0.0
        %1141 = vmatprep.subr.mxu0 0.0
        %1142 = vmatpush1.msra.mxu0 0.0
        %1143 = vmatprep.subr.mxu0 0.0
        %1144 = vmatpush1.msra.mxu0 0.0
        %1145 = vmatprep.subr.mxu0 0.0
        %1146 = vmatpush1.msra.mxu0 0.0
        %1147 = vmatprep.subr.mxu0 0.0
        %1148 = vmatpush1.msra.mxu0 0.0
        %1149 = vmatprep.subr.mxu0 0.0
        %1150 = vmatpush1.msra.mxu0 0.0
        %1151 = vmatprep.subr.mxu0 0.0
        %1152 = vmatpush1.msra.mxu0 0.0
        %1153 = vmatprep.subr.mxu0 0.0
        %1154 = vmatpush1.msra.mxu0 0.0
        %1155 = vmatprep.subr.mxu0 0.0
        %1156 = vmatpush1.msra.mxu0 0.0
        %1157 = vmatprep.subr.mxu0 0.0
        %1158 = vmatpush1.msra.mxu0 0.0
        %1159 = vmatprep.subr.mxu0 0.0
        %1160 = vmatpush1.msra.mxu0 0.0
        %1161 = vmatprep.subr.mxu0 0.0
        %1162 = vmatpush1.msra.mxu0 0.0
        %1163 = vmatprep.subr.mxu0 0.0
        %1164 = vmatpush1.msra.mxu0 0.0
        %1165 = vmatprep.subr.mxu0 0.0
        %1166 = vmatpush1.msra.mxu0 0.0
        %1167 = vmatprep.subr.mxu0 0.0
        %1168 = vmatpush1.msra.mxu0 0.0
        %1169 = vmatprep.subr.mxu0 0.0
        %1170 = vmatpush1.msra.mxu0 0.0
        %1171 = vmatprep.subr.mxu0 0.0
        %1172 = vmatpush1.msra.mxu0 0.0
        %1173 = vmatprep.subr.mxu0 0.0
        %1174 = vmatpush1.msra.mxu0 0.0
        %1175 = vmatprep.subr.mxu0 0.0
        %1176 = vmatpush1.msra.mxu0 0.0
        %1177 = vmatprep.subr.mxu0 0.0
        %1178 = vmatpush1.msra.mxu0 0.0
        %1179 = vmatprep.mubr.f32.mxu0 0.0
        %v1180 = vand.u32 %v171, 4294901760
        %1181 = vmatmul.mubr.f32.gmra.mrb[0].mxu0 %v1180
        %v1182 = vpop.f32.mrb[0].mxu0
        %v1183 = vadd.f32 %v1112, %v1182
        %v1184 = vpop.f32.mrb[0].mxu0
        %1185 = vdwg.mxu0
        %1186 = vmatprep.subr.mxu0 0.0
        %1187 = vmatpush1.msra.mxu0 0.0
        %1188 = vmatprep.subr.mxu0 0.0
        %1189 = vmatpush1.msra.mxu0 0.0
        %1190 = vmatprep.subr.mxu0 0.0
        %1191 = vmatpush1.msra.mxu0 0.0
        %1192 = vmatprep.subr.mxu0 0.0
        %1193 = vmatpush1.msra.mxu0 0.0
        %1194 = vmatprep.subr.mxu0 0.0
        %1195 = vmatpush1.msra.mxu0 0.0
        %1196 = vmatprep.subr.mxu0 0.0
        %1197 = vmatpush1.msra.mxu0 0.0
        %1198 = vmatprep.subr.mxu0 0.0
        %1199 = vmatpush1.msra.mxu0 0.0
        %1200 = vmatprep.subr.mxu0 0.0
        %1201 = vmatpush1.msra.mxu0 0.0
        %1202 = vmatprep.subr.mxu0 0.0
        %1203 = vmatpush1.msra.mxu0 0.0
        %1204 = vmatprep.subr.mxu0 0.0
        %1205 = vmatpush1.msra.mxu0 0.0
        %1206 = vmatprep.subr.mxu0 0.0
        %1207 = vmatpush1.msra.mxu0 0.0
        %1208 = vmatprep.subr.mxu0 0.0
        %1209 = vmatpush1.msra.mxu0 0.0
        %1210 = vmatprep.subr.mxu0 0.0
        %1211 = vmatpush1.msra.mxu0 0.0
        %1212 = vmatprep.subr.mxu0 0.0
        %1213 = vmatpush1.msra.mxu0 0.0
        %1214 = vmatprep.subr.mxu0 0.0
        %1215 = vmatpush1.msra.mxu0 0.0
        %1216 = vmatprep.subr.mxu0 0.0
        %1217 = vmatpush1.msra.mxu0 0.0
        %1218 = vmatprep.subr.mxu0 0.0
        %1219 = vmatpush1.msra.mxu0 0.0
        %1220 = vmatprep.subr.mxu0 0.0
        %1221 = vmatpush1.msra.mxu0 0.0
        %1222 = vmatprep.subr.mxu0 0.0
        %1223 = vmatpush1.msra.mxu0 0.0
        %1224 = vmatprep.subr.mxu0 0.0
        %1225 = vmatpush1.msra.mxu0 0.0
        %1226 = vmatprep.subr.mxu0 0.0
        %1227 = vmatpush1.msra.mxu0 0.0
        %1228 = vmatprep.subr.mxu0 0.0
        %1229 = vmatpush1.msra.mxu0 0.0
        %1230 = vmatprep.subr.mxu0 0.0
        %1231 = vmatpush1.msra.mxu0 0.0
        %1232 = vmatprep.subr.mxu0 0.0
        %1233 = vmatpush1.msra.mxu0 0.0
        %1234 = vmatprep.subr.mxu0 0.0
        %1235 = vmatpush1.msra.mxu0 0.0
        %1236 = vmatprep.subr.mxu0 0.0
        %1237 = vmatpush1.msra.mxu0 0.0
        %1238 = vmatprep.subr.mxu0 0.0
        %1239 = vmatpush1.msra.mxu0 0.0
        %1240 = vmatprep.subr.mxu0 0.0
        %1241 = vmatpush1.msra.mxu0 0.0
        %1242 = vmatprep.subr.mxu0 0.0
        %1243 = vmatpush1.msra.mxu0 0.0
        %1244 = vmatprep.subr.mxu0 0.0
        %1245 = vmatpush1.msra.mxu0 0.0
        %1246 = vmatprep.subr.mxu0 0.0
        %1247 = vmatpush1.msra.mxu0 0.0
        %1248 = vmatprep.subr.mxu0 0.0
        %1249 = vmatpush1.msra.mxu0 0.0
        %1250 = vmatprep.mubr.f32.mxu0 0.0
        %v1251 = vand.u32 %v171, 4294901760
        %v1252 = vsub.f32 %v171, %v1251
        %1253 = vmatmul.mubr.f32.gmra.mrb[0].mxu0 %v1252
        %v1254 = vpop.f32.mrb[0].mxu0
        %v1255 = vadd.f32 %v1183, %v1254
        %v1256 = vpop.f32.mrb[0].mxu0
        %1257 = vdwg.mxu0
        %1258 = vmatprep.subr.mxu0 0.0
        %1259 = vmatpush1.msra.mxu0 1.0
        %1260 = vmatprep.subr.mxu0 0.0
        %1261 = vmatpush1.msra.mxu0 1.0
        %1262 = vmatprep.subr.mxu0 0.0
        %1263 = vmatpush1.msra.mxu0 1.0
        %1264 = vmatprep.subr.mxu0 0.0
        %1265 = vmatpush1.msra.mxu0 1.0
        %1266 = vmatprep.subr.mxu0 0.0
        %1267 = vmatpush1.msra.mxu0 1.0
        %1268 = vmatprep.subr.mxu0 0.0
        %1269 = vmatpush1.msra.mxu0 1.0
        %1270 = vmatprep.subr.mxu0 0.0
        %1271 = vmatpush1.msra.mxu0 1.0
        %1272 = vmatprep.subr.mxu0 0.0
        %1273 = vmatpush1.msra.mxu0 1.0
        %1274 = vmatprep.subr.mxu0 0.0
        %1275 = vmatpush1.msra.mxu0 1.0
        %1276 = vmatprep.subr.mxu0 0.0
        %1277 = vmatpush1.msra.mxu0 1.0
        %1278 = vmatprep.subr.mxu0 0.0
        %1279 = vmatpush1.msra.mxu0 1.0
        %1280 = vmatprep.subr.mxu0 0.0
        %1281 = vmatpush1.msra.mxu0 1.0
        %1282 = vmatprep.subr.mxu0 0.0
        %1283 = vmatpush1.msra.mxu0 1.0
        %1284 = vmatprep.subr.mxu0 0.0
        %1285 = vmatpush1.msra.mxu0 1.0
        %1286 = vmatprep.subr.mxu0 0.0
        %1287 = vmatpush1.msra.mxu0 1.0
        %1288 = vmatprep.subr.mxu0 0.0
        %1289 = vmatpush1.msra.mxu0 1.0
        %1290 = vmatprep.subr.mxu0 0.0
        %1291 = vmatpush1.msra.mxu0 0.0
        %1292 = vmatprep.subr.mxu0 0.0
        %1293 = vmatpush1.msra.mxu0 0.0
        %1294 = vmatprep.subr.mxu0 0.0
        %1295 = vmatpush1.msra.mxu0 0.0
        %1296 = vmatprep.subr.mxu0 0.0
        %1297 = vmatpush1.msra.mxu0 0.0
        %1298 = vmatprep.subr.mxu0 0.0
        %1299 = vmatpush1.msra.mxu0 0.0
        %1300 = vmatprep.subr.mxu0 0.0
        %1301 = vmatpush1.msra.mxu0 0.0
        %1302 = vmatprep.subr.mxu0 0.0
        %1303 = vmatpush1.msra.mxu0 0.0
        %1304 = vmatprep.subr.mxu0 0.0
        %1305 = vmatpush1.msra.mxu0 0.0
        %1306 = vmatprep.subr.mxu0 0.0
        %1307 = vmatpush1.msra.mxu0 0.0
        %1308 = vmatprep.subr.mxu0 0.0
        %1309 = vmatpush1.msra.mxu0 0.0
        %1310 = vmatprep.subr.mxu0 0.0
        %1311 = vmatpush1.msra.mxu0 0.0
        %1312 = vmatprep.subr.mxu0 0.0
        %1313 = vmatpush1.msra.mxu0 0.0
        %1314 = vmatprep.subr.mxu0 0.0
        %1315 = vmatpush1.msra.mxu0 0.0
        %1316 = vmatprep.subr.mxu0 0.0
        %1317 = vmatpush1.msra.mxu0 0.0
        %1318 = vmatprep.subr.mxu0 0.0
        %1319 = vmatpush1.msra.mxu0 0.0
        %1320 = vmatprep.subr.mxu0 0.0
        %1321 = vmatpush1.msra.mxu0 0.0
        %1322 = vmatprep.mubr.f32.mxu0 0.0
        %v1323 = vand.u32 %v171, 4294901760
        %v1324 = vsub.f32 %v171, %v1323
        %v1325 = vand.u32 %v1324, 4294901760
        %1326 = vmatmul.mubr.f32.gmra.mrb[0].mxu0 %v1325
        %v1327 = vpop.f32.mrb[0].mxu0
        %v1328 = vadd.f32 %v1255, %v1327
        %v1329 = vpop.f32.mrb[0].mxu0
        %1330 = vdwg.mxu0
        %1331 = vmatprep.subr.mxu0 0.0
        %1332 = vmatpush1.msra.mxu0 0.0
        %1333 = vmatprep.subr.mxu0 0.0
        %1334 = vmatpush1.msra.mxu0 0.0
        %1335 = vmatprep.subr.mxu0 0.0
        %1336 = vmatpush1.msra.mxu0 0.0
        %1337 = vmatprep.subr.mxu0 0.0
        %1338 = vmatpush1.msra.mxu0 0.0
        %1339 = vmatprep.subr.mxu0 0.0
        %1340 = vmatpush1.msra.mxu0 0.0
        %1341 = vmatprep.subr.mxu0 0.0
        %1342 = vmatpush1.msra.mxu0 0.0
        %1343 = vmatprep.subr.mxu0 0.0
        %1344 = vmatpush1.msra.mxu0 0.0
        %1345 = vmatprep.subr.mxu0 0.0
        %1346 = vmatpush1.msra.mxu0 0.0
        %1347 = vmatprep.subr.mxu0 0.0
        %1348 = vmatpush1.msra.mxu0 0.0
        %1349 = vmatprep.subr.mxu0 0.0
        %1350 = vmatpush1.msra.mxu0 0.0
        %1351 = vmatprep.subr.mxu0 0.0
        %1352 = vmatpush1.msra.mxu0 0.0
        %1353 = vmatprep.subr.mxu0 0.0
        %1354 = vmatpush1.msra.mxu0 0.0
        %1355 = vmatprep.subr.mxu0 0.0
        %1356 = vmatpush1.msra.mxu0 0.0
        %1357 = vmatprep.subr.mxu0 0.0
        %1358 = vmatpush1.msra.mxu0 0.0
        %1359 = vmatprep.subr.mxu0 0.0
        %1360 = vmatpush1.msra.mxu0 0.0
        %1361 = vmatprep.subr.mxu0 0.0
        %1362 = vmatpush1.msra.mxu0 0.0
        %1363 = vmatprep.subr.mxu0 0.0
        %1364 = vmatpush1.msra.mxu0 0.0
        %1365 = vmatprep.subr.mxu0 0.0
        %1366 = vmatpush1.msra.mxu0 0.0
        %1367 = vmatprep.subr.mxu0 0.0
        %1368 = vmatpush1.msra.mxu0 0.0
        %1369 = vmatprep.subr.mxu0 0.0
        %1370 = vmatpush1.msra.mxu0 0.0
        %1371 = vmatprep.subr.mxu0 0.0
        %1372 = vmatpush1.msra.mxu0 0.0
        %1373 = vmatprep.subr.mxu0 0.0
        %1374 = vmatpush1.msra.mxu0 0.0
        %1375 = vmatprep.subr.mxu0 0.0
        %1376 = vmatpush1.msra.mxu0 0.0
        %1377 = vmatprep.subr.mxu0 0.0
        %1378 = vmatpush1.msra.mxu0 0.0
        %1379 = vmatprep.subr.mxu0 0.0
        %1380 = vmatpush1.msra.mxu0 0.0
        %1381 = vmatprep.subr.mxu0 0.0
        %1382 = vmatpush1.msra.mxu0 0.0
        %1383 = vmatprep.subr.mxu0 0.0
        %1384 = vmatpush1.msra.mxu0 0.0
        %1385 = vmatprep.subr.mxu0 0.0
        %1386 = vmatpush1.msra.mxu0 0.0
        %1387 = vmatprep.subr.mxu0 0.0
        %1388 = vmatpush1.msra.mxu0 0.0
        %1389 = vmatprep.subr.mxu0 0.0
        %1390 = vmatpush1.msra.mxu0 0.0
        %1391 = vmatprep.subr.mxu0 0.0
        %1392 = vmatpush1.msra.mxu0 0.0
        %1393 = vmatprep.subr.mxu0 0.0
        %1394 = vmatpush1.msra.mxu0 0.0
        %1395 = vmatprep.mubr.f32.mxu0 0.0
        %v1396 = vand.u32 %v171, 4294901760
        %1397 = vmatmul.mubr.f32.gmra.mrb[0].mxu0 %v1396
        %v1398 = vpop.f32.mrb[0].mxu0
        %v1399 = vadd.f32 %v1328, %v1398
        %v1400 = vpop.f32.mrb[0].mxu0
        %1401 = vdwg.mxu0
        %1402 = vmatprep.subr.mxu0 0.0
        %1403 = vmatpush1.msra.mxu0 1.0
        %1404 = vmatprep.subr.mxu0 0.0
        %1405 = vmatpush1.msra.mxu0 1.0
        %1406 = vmatprep.subr.mxu0 0.0
        %1407 = vmatpush1.msra.mxu0 1.0
        %1408 = vmatprep.subr.mxu0 0.0
        %1409 = vmatpush1.msra.mxu0 1.0
        %1410 = vmatprep.subr.mxu0 0.0
        %1411 = vmatpush1.msra.mxu0 1.0
        %1412 = vmatprep.subr.mxu0 0.0
        %1413 = vmatpush1.msra.mxu0 1.0
        %1414 = vmatprep.subr.mxu0 0.0
        %1415 = vmatpush1.msra.mxu0 1.0
        %1416 = vmatprep.subr.mxu0 0.0
        %1417 = vmatpush1.msra.mxu0 1.0
        %1418 = vmatprep.subr.mxu0 0.0
        %1419 = vmatpush1.msra.mxu0 1.0
        %1420 = vmatprep.subr.mxu0 0.0
        %1421 = vmatpush1.msra.mxu0 1.0
        %1422 = vmatprep.subr.mxu0 0.0
        %1423 = vmatpush1.msra.mxu0 1.0
        %1424 = vmatprep.subr.mxu0 0.0
        %1425 = vmatpush1.msra.mxu0 1.0
        %1426 = vmatprep.subr.mxu0 0.0
        %1427 = vmatpush1.msra.mxu0 1.0
        %1428 = vmatprep.subr.mxu0 0.0
        %1429 = vmatpush1.msra.mxu0 1.0
        %1430 = vmatprep.subr.mxu0 0.0
        %1431 = vmatpush1.msra.mxu0 1.0
        %1432 = vmatprep.subr.mxu0 0.0
        %1433 = vmatpush1.msra.mxu0 1.0
        %1434 = vmatprep.subr.mxu0 0.0
        %1435 = vmatpush1.msra.mxu0 0.0
        %1436 = vmatprep.subr.mxu0 0.0
        %1437 = vmatpush1.msra.mxu0 0.0
        %1438 = vmatprep.subr.mxu0 0.0
        %1439 = vmatpush1.msra.mxu0 0.0
        %1440 = vmatprep.subr.mxu0 0.0
        %1441 = vmatpush1.msra.mxu0 0.0
        %1442 = vmatprep.subr.mxu0 0.0
        %1443 = vmatpush1.msra.mxu0 0.0
        %1444 = vmatprep.subr.mxu0 0.0
        %1445 = vmatpush1.msra.mxu0 0.0
        %1446 = vmatprep.subr.mxu0 0.0
        %1447 = vmatpush1.msra.mxu0 0.0
        %1448 = vmatprep.subr.mxu0 0.0
        %1449 = vmatpush1.msra.mxu0 0.0
        %1450 = vmatprep.subr.mxu0 0.0
        %1451 = vmatpush1.msra.mxu0 0.0
        %1452 = vmatprep.subr.mxu0 0.0
        %1453 = vmatpush1.msra.mxu0 0.0
        %1454 = vmatprep.subr.mxu0 0.0
        %1455 = vmatpush1.msra.mxu0 0.0
        %1456 = vmatprep.subr.mxu0 0.0
        %1457 = vmatpush1.msra.mxu0 0.0
        %1458 = vmatprep.subr.mxu0 0.0
        %1459 = vmatpush1.msra.mxu0 0.0
        %1460 = vmatprep.subr.mxu0 0.0
        %1461 = vmatpush1.msra.mxu0 0.0
        %1462 = vmatprep.subr.mxu0 0.0
        %1463 = vmatpush1.msra.mxu0 0.0
        %1464 = vmatprep.subr.mxu0 0.0
        %1465 = vmatpush1.msra.mxu0 0.0
        %1466 = vmatprep.mubr.f32.mxu0 0.0
        %v1467 = vand.u32 %v171, 4294901760
        %1468 = vmatmul.mubr.f32.gmra.mrb[0].mxu0 %v1467
        %v1469 = vpop.f32.mrb[0].mxu0
        %v1470 = vadd.f32 %v1399, %v1469
        %v1471 = vpop.f32.mrb[0].mxu0
        %1472 = vdwg.mxu0
        %v1473 = vlog2.pop %v604
        %v1474 = vmul.f32 %v1473, 0.6931472
        %v1475 = vsub.f32 %v1474, %v173
        %v1476 = vmul.f32 %v1475, 0.95
        %v1477 = vmul.f32 %v1474, 0.05
        %v1478 = vadd.f32 %v1476, %v1477
        %v1479 = vmul.f32 %v1037, 0.000390625
        %v1480 = vsub.f32 %v1478, %v1479
        %v1481 = vrcp.pop %v604
        %v1482 = vmul.f32 %v1470, %v1481
        %v1483 = vsub.f32 1.0, %v1482
        %v1484 = vmax.f32 %v1483, 0.0
        %v1485 = vrsqrt.pop %v1484
        %v1486 = vmul.f32 %v1484, %v1485
        %vm1487 = vcmp.eq.f32.partialorder %v1484, inf
        %v1488 = vsel %vm1487, %v1484, %v1486
        %vm1489 = vcmp.eq.f32.partialorder %v1484, 0.0
        %v1490 = vand.u32 %v1484, 2147483648
        %v1491 = vsel %vm1489, %v1490, %v1488
        %v1492 = vmul.f32 %v1484, %v1491
        %v1493 = vmul.f32 %v1492, %v1480
        %v1494 = vlaneseq
        %v1495 = vshrl.u32 %v1494, 7
        %s1496 = smul.u32 %s16, 8
        %v1497 = vstv %s1496
        %v1498 = vadd.s32 %v1497, %v1495
        %vm1499 = vcmp.lt.s32.totalorder %v1498, 45
        %v1500 = vsel %vm1499, %v1493, 0.0
        %vm1501 = vcmask 7168
        %v1502 = vsel %vm1501, %v1500, 0.0
        %1503 = vadd.xlane.f32.xlu0 %v1502
        %v1504 = vpop.xlane.xlu0 %1503
        %v1505 = vrot.slane %v1504, 4
        %v1506 = vadd.f32 %v1504, %v1505
        %v1507 = vrot.slane %v1506, 2
        %v1508 = vadd.f32 %v1506, %v1507
        %v1509 = vrot.slane %v1508, 1
        %v1510 = vadd.f32 %v1508, %v1509
        %s1511 = vtos %v1510
        %v1512 = vstv %s1511
        %1513 = vst [vmem:[%s147] sm:$0xff] %v1512
        %s1514 = sand.u32 %s76, 1
        %s1515 = scalar_lea.sflag [#allocation3], %s1514
        %s1516 = sand.u32 %s76, 1
        %s1517 = smul.addr %s1516, 8
        %s1518 = scalar_lea.vmem [#allocation2], %s1517
        // Predicated region
        $region29: #{tpu_custom_call.1} parent=27 // pred_check
          %p1519 = pneg %p86
        $region30: #{tpu_custom_call.1} parent=27 // pred_check_branch
          %1521 = sbr.rel (%p1519) target = $region32
        $region31: #{tpu_custom_call.1} parent=27 // pred_region
          %s1523 = ssub.s32 128, 128
          %1524 = vsyncadd %s1515, %s1523
          %s1525 = smul.addr %s16, 128
          %s1526 = scalar_lea.hbm %s2, %s1525
          %s1528 = sshll.u32 %s1518, 4
          %s1529 = int_to_ptr.vmem [resolvable:$true] %s1528
          %1531 = dma.vmem_to_hbm [thread:$0]  %s1529, 128, %s1526, %s1515
        $region32: #{tpu_custom_call.1} parent=27 // pred_fallthru
          _
      $region28: #{tpu_custom_call.1} parent=5 // pred_fallthru
        _
      %p1532 = scmp.le.s32.totalorder 2, %s11
      // Predicated region
      $region33: #{tpu_custom_call.1} parent=5 // pred_check
        %p1533 = pneg %p1532
      $region34: #{tpu_custom_call.1} parent=5 // pred_check_branch
        %1535 = sbr.rel (%p1533) target = $region36
      $region35: #{tpu_custom_call.1} parent=5 // pred_region
        %s1536 = ssub.s32 %s11, 2
        // Predicated region
        $region37: #{tpu_custom_call.1} parent=35 // pred_check
          %p1537 = pneg %p92
        $region38: #{tpu_custom_call.1} parent=35 // pred_check_branch
          %1539 = sbr.rel (%p1537) target = $region40
        $region39: #{tpu_custom_call.1} parent=35 // pred_region
          %s1540 = sand.u32 %s77, 1
          %s1541 = scalar_lea.sflag [#allocation3], %s1540
          %s1542 = sand.u32 %s77, 1
          %s1543 = smul.addr %s1542, 8
          %s1544 = scalar_lea.vmem [#allocation2], %s1543
          %1545 = dma.done %s1541, 128
        $region40: #{tpu_custom_call.1} parent=35 // pred_fallthru
          _
      $region36: #{tpu_custom_call.1} parent=5 // pred_fallthru
        _
    $region6: #{tpu_custom_call.1} parent=1 // loop_footer
      %s15 = sadd.s32 1, %s11
    $region7: #{tpu_custom_call.1} parent=1 // loop_footer_branch
      %10 = sbr.rel target = $region3
    $region8: #{tpu_custom_call.1} parent=1 // loop_exit
      _
    %1546 = vsyncpa [#allocation3], 1
    %s1547 = scalar_lea.sflag [#allocation3], 1
    %1548 = vsyncpa %s1547, 1

</llo_original>
